<compile_context>
chip_gen: v5e
topology: v5e:2x2
jax: 0.10.0
libtpu: 0.0.40
codegen_flags: <defaults>
</compile_context>

<pallas_src>
import functools

import jax
import jax.numpy as jnp
from jax import lax
from jax.experimental import pallas as pl
from jax.experimental.pallas import tpu as pltpu


# ----------------------------------------------------------------------------
# Pallas kernel: fused recurrent part of the two sub-LSTMs.
# Rows [0:2B] belong to module_real, rows [2B:4B] to module_imag; both see the
# packed [real|imag] input streams.  PyTorch gate order i, f, g, o.
# ----------------------------------------------------------------------------
def _fused_lstm_kernel(gx_ref, whh_ref, y_ref, h_scr, c_scr, *,
                       t_chunk, hp, rows_per_module):
    # gx_ref : (Tc, R2, 4Hp) bf16  precomputed x @ W_ih^T + b (both modules)
    # whh_ref: (2, Hp, 4Hp)  bf16  recurrent weights (module_real, module_imag)
    # y_ref  : (Tc, R2, Hp)  bf16  hidden-state outputs
    # h_scr/c_scr: (R2, Hp)  f32   recurrent state, persists across chunks
    @pl.when(pl.program_id(0) == 0)          # time axis restarts -> reset state
    def _():
        h_scr[...] = jnp.zeros_like(h_scr)
        c_scr[...] = jnp.zeros_like(c_scr)

    # Loop-invariant: hoisted out of the time loop.
    whh_r = whh_ref[0]                        # (Hp, 4Hp)
    whh_i = whh_ref[1]
    r2 = h_scr.shape[0]
    row_is_real = (lax.broadcasted_iota(jnp.int32, (r2, 4 * hp), 0)
                   < rows_per_module)         # (R2, 4Hp) row-ownership mask

    def step(t, carry):
        h, c = carry                          # (R2, Hp) f32
        h_bf = h.astype(jnp.bfloat16)
        # Two independent recurrent dots (one per module) -- they overlap in
        # the MXU pipeline; a VPU select picks the right rows (no sublane
        # shuffles / concat on the serial critical path).
        g_r = jnp.dot(h_bf, whh_r, preferred_element_type=jnp.float32)
        g_i = jnp.dot(h_bf, whh_i, preferred_element_type=jnp.float32)
        gates = gx_ref[t].astype(jnp.float32) + jnp.where(row_is_real, g_r, g_i)
        # sigmoid(x) = 0.5*tanh(0.5*x) + 0.5 : tanh-only gates cut EUP pushes.
        i_g = 0.5 * jnp.tanh(0.5 * gates[:, 0 * hp:1 * hp]) + 0.5
        f_g = 0.5 * jnp.tanh(0.5 * gates[:, 1 * hp:2 * hp]) + 0.5
        g_g = jnp.tanh(gates[:, 2 * hp:3 * hp])
        o_g = 0.5 * jnp.tanh(0.5 * gates[:, 3 * hp:4 * hp]) + 0.5
        c = f_g * c + i_g * g_g
        h = o_g * jnp.tanh(c)
        y_ref[t] = h.astype(y_ref.dtype)
        return h, c

    h, c = lax.fori_loop(0, t_chunk, step, (h_scr[...], c_scr[...]),
                         unroll=min(8, t_chunk))
    h_scr[...] = h
    c_scr[...] = c


# ----------------------------------------------------------------------------
# Helpers
# ----------------------------------------------------------------------------
def _pad_gate_blocks(w, h, hp):
    """Pad last dim 4h -> 4hp, padding each of the i/f/g/o blocks with zeros."""
    if hp == h:
        return w
    parts = jnp.split(w, 4, axis=-1)
    pad = [(0, 0)] * (w.ndim - 1) + [(0, hp - h)]
    return jnp.concatenate([jnp.pad(p, pad) for p in parts], axis=-1)


# ----------------------------------------------------------------------------
# SingleLayerComplexLSTM forward
# ----------------------------------------------------------------------------
def single_layer_complex_lstm(real, imag, params_real, params_imag, *,
                              t_chunk=64):
    """real, imag: (T, B, D).  Returns (out_real, out_imag), each (T, B, H)."""
    T, B, D = real.shape
    wih_r, whh_r, b_r = params_real            # (D,4H), (H,4H), (4H,)
    wih_i, whh_i, b_i = params_imag
    H = whh_r.shape[0]
    Hp = ((H + 127) // 128) * 128              # lane-align gates & output

    def prep(wih, whh, b):
        wih_p = _pad_gate_blocks(wih, H, Hp)                       # (D, 4Hp)
        whh_p = _pad_gate_blocks(whh, H, Hp)                       # (H, 4Hp)
        whh_p = jnp.pad(whh_p, ((0, Hp - H), (0, 0)))              # (Hp, 4Hp)
        b_p = _pad_gate_blocks(b, H, Hp)                           # (4Hp,)
        return wih_p, whh_p, b_p

    wih_rp, whh_rp, b_rp = prep(wih_r, whh_r, b_r)
    wih_ip, whh_ip, b_ip = prep(wih_i, whh_i, b_i)

    # Each sub-LSTM sees both streams -> pack [real|imag] along the batch axis.
    x2 = jnp.concatenate([real, imag], axis=1)                     # (T, 2B, D)

    wih_stacked = jnp.stack([wih_rp, wih_ip], axis=0)              # (2, D, 4Hp)
    bias_stacked = jnp.stack([b_rp, b_ip], axis=0)                 # (2, 4Hp)

    # Hoisted time-parallel input projection: one XLA GEMM for both modules
    # and both streams; handed to the kernel in bf16.
    gx = (jnp.einsum('tbd,mdg->tmbg', x2, wih_stacked)
          + bias_stacked[None, :, None, :])                        # (T,2,2B,4Hp)
    R2 = 2 * 2 * B                                                 # module-major rows
    gx = gx.reshape(T, R2, 4 * Hp).astype(jnp.bfloat16)

    whh_stacked = jnp.stack([whh_rp, whh_ip], axis=0).astype(jnp.bfloat16)

    # Time chunking (pad tail steps run on zero inputs; outputs discarded).
    t_chunk = max(1, min(t_chunk, T))
    t_pad = pl.cdiv(T, t_chunk) * t_chunk
    if t_pad != T:
        gx = jnp.pad(gx, ((0, t_pad - T), (0, 0), (0, 0)))
    n_chunks = t_pad // t_chunk

    kernel = functools.partial(_fused_lstm_kernel, t_chunk=t_chunk, hp=Hp,
                               rows_per_module=2 * B)

    grid_spec = pltpu.PrefetchScalarGridSpec(
        num_scalar_prefetch=0,
        grid=(n_chunks,),                                   # time chunks only
        in_specs=[
            pl.BlockSpec((t_chunk, R2, 4 * Hp), lambda c: (c, 0, 0)),
            pl.BlockSpec((2, Hp, 4 * Hp), lambda c: (0, 0, 0)),
        ],
        out_specs=pl.BlockSpec((t_chunk, R2, Hp), lambda c: (c, 0, 0)),
        scratch_shapes=[
            pltpu.VMEM((R2, Hp), jnp.float32),              # hidden state h
            pltpu.VMEM((R2, Hp), jnp.float32),              # cell state c
        ],
    )

    y = pl.pallas_call(
        kernel,
        out_shape=jax.ShapeDtypeStruct((t_pad, R2, Hp), jnp.bfloat16),
        grid_spec=grid_spec,
        compiler_params=pltpu.CompilerParams(
            # The chunked time axis carries h/c state -> must stay "arbitrary".
            dimension_semantics=("arbitrary",),
            vmem_limit_bytes=32 * 1024 * 1024,
        ),
    )(gx, whh_stacked)

    y = y[:T, :, :H].astype(jnp.float32)                    # (T, 4B, H)
    real_real = y[:, 0 * B:1 * B]                           # module_real(real)
    real_imag = y[:, 1 * B:2 * B]                           # module_real(imag)
    imag_real = y[:, 2 * B:3 * B]                           # module_imag(real)
    imag_imag = y[:, 3 * B:4 * B]                           # module_imag(imag)

    out_real = real_real - imag_imag
    out_imag = real_imag + imag_real
    return out_real, out_imag


# ----------------------------------------------------------------------------
# Pure-JAX reference (lax.scan LSTM) for correctness check
# ----------------------------------------------------------------------------
def lstm_ref(x, w_ih_t, w_hh_t, bias):
    T, B, D = x.shape
    H = w_hh_t.shape[0]

    def step(carry, x_t):
        h, c = carry
        gates = x_t @ w_ih_t + h @ w_hh_t + bias
        i = jax.nn.sigmoid(gates[:, 0 * H:1 * H])
        f = jax.nn.sigmoid(gates[:, 1 * H:2 * H])
        g = jnp.tanh(gates[:, 2 * H:3 * H])
        o = jax.nn.sigmoid(gates[:, 3 * H:4 * H])
        c = f * c + i * g
        h = o * jnp.tanh(c)
        return (h, c), h

    init = (jnp.zeros((B, H), jnp.float32), jnp.zeros((B, H), jnp.float32))
    _, ys = lax.scan(step, init, x)
    return ys


def complex_lstm_ref(real, imag, pr, pi):
    rr = lstm_ref(real, *pr)
    ii = lstm_ref(imag, *pi)
    ri = lstm_ref(imag, *pr)
    ir = lstm_ref(real, *pi)
    return rr - ii, ri + ir


# ----------------------------------------------------------------------------
# Deterministic parameter init (PyTorch nn.LSTM: uniform(-1/sqrt(H), 1/sqrt(H)))
# ----------------------------------------------------------------------------
def init_lstm_params(key, input_size, hidden_size):
    k = 1.0 / jnp.sqrt(hidden_size)
    k1, k2, k3, k4 = jax.random.split(key, 4)
    w_ih = jax.random.uniform(k1, (4 * hidden_size, input_size), jnp.float32, -k, k)
    w_hh = jax.random.uniform(k2, (4 * hidden_size, hidden_size), jnp.float32, -k, k)
    b_ih = jax.random.uniform(k3, (4 * hidden_size,), jnp.float32, -k, k)
    b_hh = jax.random.uniform(k4, (4 * hidden_size,), jnp.float32, -k, k)
    # Pre-transpose weights and fold biases for the kernel.
    return (w_ih.T, w_hh.T, b_ih + b_hh)


if __name__ == "__main__":
    T, B, D, H = 8, 2, 16, 32   # seq=8, batch=2, input_size=16, hidden_size=32

    key = jax.random.PRNGKey(0)
    k_real, k_imag, k_xr, k_xi = jax.random.split(key, 4)

    params_real = init_lstm_params(k_real, D, H)
    params_imag = init_lstm_params(k_imag, D, H)

    real = jax.random.normal(k_xr, (T, B, D), jnp.float32)
    imag = jax.random.normal(k_xi, (T, B, D), jnp.float32)

    out_real, out_imag = single_layer_complex_lstm(
        real, imag, params_real, params_imag, t_chunk=64)
    jax.block_until_ready((out_real, out_imag))

    # Correctness check vs. pure-JAX f32 reference.  Tolerance accommodates the
    # bf16 operands (gx / W_hh / y) with f32 state & accumulation.
    ref_real, ref_imag = complex_lstm_ref(real, imag, params_real, params_imag)
    assert out_real.shape == (T, B, H) and out_imag.shape == (T, B, H)
    err_r = float(jnp.max(jnp.abs(out_real - ref_real)))
    err_i = float(jnp.max(jnp.abs(out_imag - ref_imag)))
    assert err_r < 5e-2 and err_i < 5e-2, (err_r, err_i)

    print("KERNEL_OK")
</pallas_src>

<mosaic_0001>
module attributes {stable_mosaic.version = 11 : i64} {
  func.func @_fused_lstm_kernel(%arg0: i32, %arg1: memref<8x8x512xbf16, #tpu.memory_space<vmem>>, %arg2: memref<2x128x512xbf16, #tpu.memory_space<vmem>>, %arg3: memref<8x8x128xbf16, #tpu.memory_space<vmem>>, %arg4: memref<8x128xf32, #tpu.memory_space<vmem>>, %arg5: memref<8x128xf32, #tpu.memory_space<vmem>>) attributes {dimension_semantics = [#tpu.dimension_semantics<arbitrary>], iteration_bounds = array<i64: 1>, scalar_prefetch = 0 : i64, scratch_operands = 2 : i64, tpu.core_type = #tpu.core_type<tc>, window_params = [{transform_indices = @transform_0, window_bounds = array<i64: 8, 8, 512>}, {pipeline_mode = #tpu.pipeline_mode<synchronous>, transform_indices = @transform_1, window_bounds = array<i64: 2, 128, 512>}, {transform_indices = @transform_2, window_bounds = array<i64: 8, 8, 128>}]} {
    %c0_i32 = arith.constant 0 : i32
    %0 = arith.cmpi eq, %arg0, %c0_i32 : i32
    %1 = arith.extui %0 : i1 to i32
    %c0_i32_0 = arith.constant 0 : i32
    %2 = arith.cmpi ne, %1, %c0_i32_0 : i32
    scf.if %2 {
      %cst_134 = arith.constant 0.000000e+00 : f32
      %374 = vector.broadcast %cst_134 : f32 to vector<8x128xf32>
      %c0_135 = arith.constant 0 : index
      %c0_136 = arith.constant 0 : index
      %375 = vector.load %arg4[%c0_135, %c0_136] : memref<8x128xf32, #tpu.memory_space<vmem>>, vector<8x128xf32>
      tpu.vector_store %arg4[%c0_135, %c0_136], %374 {strides = array<i32>} : memref<8x128xf32, #tpu.memory_space<vmem>>, vector<8x128xf32>,
      %cst_137 = arith.constant 0.000000e+00 : f32
      %376 = vector.broadcast %cst_137 : f32 to vector<8x128xf32>
      %c0_138 = arith.constant 0 : index
      %c0_139 = arith.constant 0 : index
      %377 = vector.load %arg5[%c0_138, %c0_139] : memref<8x128xf32, #tpu.memory_space<vmem>>, vector<8x128xf32>
      tpu.vector_store %arg5[%c0_138, %c0_139], %376 {strides = array<i32>} : memref<8x128xf32, #tpu.memory_space<vmem>>, vector<8x128xf32>,
    } else {
    }
    %c0 = arith.constant 0 : index
    %c0_1 = arith.constant 0 : index
    %c0_2 = arith.constant 0 : index
    %3 = vector.load %arg2[%c0, %c0_1, %c0_2] : memref<2x128x512xbf16, #tpu.memory_space<vmem>>, vector<1x128x512xbf16>
    %4 = vector.shape_cast %3 : vector<1x128x512xbf16> to vector<128x512xbf16>
    %c1 = arith.constant 1 : index
    %c0_3 = arith.constant 0 : index
    %c0_4 = arith.constant 0 : index
    %5 = vector.load %arg2[%c1, %c0_3, %c0_4] : memref<2x128x512xbf16, #tpu.memory_space<vmem>>, vector<1x128x512xbf16>
    %6 = vector.shape_cast %5 : vector<1x128x512xbf16> to vector<128x512xbf16>
    %7 = tpu.iota {dimensions = array<i32: 0>} : vector<8x512xi32>
    %c4_i32 = arith.constant 4 : i32
    %8 = vector.broadcast %c4_i32 : i32 to vector<8x512xi32>
    %9 = arith.cmpi slt, %7, %8 : vector<8x512xi32>
    %c0_5 = arith.constant 0 : index
    %c0_6 = arith.constant 0 : index
    %10 = vector.load %arg4[%c0_5, %c0_6] : memref<8x128xf32, #tpu.memory_space<vmem>>, vector<8x128xf32>
    %c0_7 = arith.constant 0 : index
    %c0_8 = arith.constant 0 : index
    %11 = vector.load %arg5[%c0_7, %c0_8] : memref<8x128xf32, #tpu.memory_space<vmem>>, vector<8x128xf32>
    %c0_i32_9 = arith.constant 0 : i32
    %12 = arith.truncf %10 : vector<8x128xf32> to vector<8x128xbf16>
    %cst = arith.constant dense<0.000000e+00> : vector<8x512xf32>
    %13 = tpu.matmul %12, %4, %cst {dimension_numbers = #tpu.dot_dimension_numbers<[1], [0], [0], [1], [0, 0, 1, 1], [], []>} : vector<8x128xbf16>, vector<128x512xbf16>, vector<8x512xf32> -> vector<8x512xf32>
    %cst_10 = arith.constant dense<0.000000e+00> : vector<8x512xf32>
    %14 = tpu.matmul %12, %6, %cst_10 {dimension_numbers = #tpu.dot_dimension_numbers<[1], [0], [0], [1], [0, 0, 1, 1], [], []>} : vector<8x128xbf16>, vector<128x512xbf16>, vector<8x512xf32> -> vector<8x512xf32>
    %15 = arith.index_cast %c0_i32_9 : i32 to index
    %c0_11 = arith.constant 0 : index
    %c0_12 = arith.constant 0 : index
    %16 = vector.load %arg1[%15, %c0_11, %c0_12] : memref<8x8x512xbf16, #tpu.memory_space<vmem>>, vector<1x8x512xbf16>
    %17 = vector.shape_cast %16 : vector<1x8x512xbf16> to vector<8x512xbf16>
    %18 = arith.extf %17 : vector<8x512xbf16> to vector<8x512xf32>
    %19 = arith.select %9, %13, %14 : vector<8x512xi1>, vector<8x512xf32>
    %20 = arith.addf %18, %19 : vector<8x512xf32>
    %21 = vector.extract_strided_slice %20 {offsets = [0, 0], sizes = [8, 128], strides = [1, 1]} : vector<8x512xf32> to vector<8x128xf32>
    %cst_13 = arith.constant 5.000000e-01 : f32
    %22 = vector.broadcast %cst_13 : f32 to vector<8x128xf32>
    %23 = arith.mulf %22, %21 : vector<8x128xf32>
    %24 = math.tanh %23 : vector<8x128xf32>
    %cst_14 = arith.constant 5.000000e-01 : f32
    %25 = vector.broadcast %cst_14 : f32 to vector<8x128xf32>
    %26 = arith.mulf %25, %24 : vector<8x128xf32>
    %cst_15 = arith.constant 5.000000e-01 : f32
    %27 = vector.broadcast %cst_15 : f32 to vector<8x128xf32>
    %28 = arith.addf %26, %27 : vector<8x128xf32>
    %29 = vector.extract_strided_slice %20 {offsets = [0, 128], sizes = [8, 128], strides = [1, 1]} : vector<8x512xf32> to vector<8x128xf32>
    %cst_16 = arith.constant 5.000000e-01 : f32
    %30 = vector.broadcast %cst_16 : f32 to vector<8x128xf32>
    %31 = arith.mulf %30, %29 : vector<8x128xf32>
    %32 = math.tanh %31 : vector<8x128xf32>
    %cst_17 = arith.constant 5.000000e-01 : f32
    %33 = vector.broadcast %cst_17 : f32 to vector<8x128xf32>
    %34 = arith.mulf %33, %32 : vector<8x128xf32>
    %cst_18 = arith.constant 5.000000e-01 : f32
    %35 = vector.broadcast %cst_18 : f32 to vector<8x128xf32>
    %36 = arith.addf %34, %35 : vector<8x128xf32>
    %37 = vector.extract_strided_slice %20 {offsets = [0, 256], sizes = [8, 128], strides = [1, 1]} : vector<8x512xf32> to vector<8x128xf32>
    %38 = math.tanh %37 : vector<8x128xf32>
    %39 = vector.extract_strided_slice %20 {offsets = [0, 384], sizes = [8, 128], strides = [1, 1]} : vector<8x512xf32> to vector<8x128xf32>
    %cst_19 = arith.constant 5.000000e-01 : f32
    %40 = vector.broadcast %cst_19 : f32 to vector<8x128xf32>
    %41 = arith.mulf %40, %39 : vector<8x128xf32>
    %42 = math.tanh %41 : vector<8x128xf32>
    %cst_20 = arith.constant 5.000000e-01 : f32
    %43 = vector.broadcast %cst_20 : f32 to vector<8x128xf32>
    %44 = arith.mulf %43, %42 : vector<8x128xf32>
    %cst_21 = arith.constant 5.000000e-01 : f32
    %45 = vector.broadcast %cst_21 : f32 to vector<8x128xf32>
    %46 = arith.addf %44, %45 : vector<8x128xf32>
    %47 = arith.mulf %36, %11 : vector<8x128xf32>
    %48 = arith.mulf %28, %38 : vector<8x128xf32>
    %49 = arith.addf %47, %48 : vector<8x128xf32>
    %50 = math.tanh %49 : vector<8x128xf32>
    %51 = arith.mulf %46, %50 : vector<8x128xf32>
    %52 = arith.truncf %51 : vector<8x128xf32> to vector<8x128xbf16>
    %53 = arith.index_cast %c0_i32_9 : i32 to index
    %c0_22 = arith.constant 0 : index
    %c0_23 = arith.constant 0 : index
    %54 = vector.load %arg3[%53, %c0_22, %c0_23] : memref<8x8x128xbf16, #tpu.memory_space<vmem>>, vector<1x8x128xbf16>
    %55 = vector.shape_cast %54 : vector<1x8x128xbf16> to vector<8x128xbf16>
    %56 = vector.shape_cast %52 : vector<8x128xbf16> to vector<1x8x128xbf16>
    tpu.vector_store %arg3[%53, %c0_22, %c0_23], %56 {strides = array<i32>} : memref<8x8x128xbf16, #tpu.memory_space<vmem>>, vector<1x8x128xbf16>,
    %c1_i32 = arith.constant 1 : i32
    %57 = arith.truncf %51 : vector<8x128xf32> to vector<8x128xbf16>
    %cst_24 = arith.constant dense<0.000000e+00> : vector<8x512xf32>
    %58 = tpu.matmul %57, %4, %cst_24 {dimension_numbers = #tpu.dot_dimension_numbers<[1], [0], [0], [1], [0, 0, 1, 1], [], []>} : vector<8x128xbf16>, vector<128x512xbf16>, vector<8x512xf32> -> vector<8x512xf32>
    %cst_25 = arith.constant dense<0.000000e+00> : vector<8x512xf32>
    %59 = tpu.matmul %57, %6, %cst_25 {dimension_numbers = #tpu.dot_dimension_numbers<[1], [0], [0], [1], [0, 0, 1, 1], [], []>} : vector<8x128xbf16>, vector<128x512xbf16>, vector<8x512xf32> -> vector<8x512xf32>
    %60 = arith.index_cast %c1_i32 : i32 to index
    %c0_26 = arith.constant 0 : index
    %c0_27 = arith.constant 0 : index
    %61 = vector.load %arg1[%60, %c0_26, %c0_27] : memref<8x8x512xbf16, #tpu.memory_space<vmem>>, vector<1x8x512xbf16>
    %62 = vector.shape_cast %61 : vector<1x8x512xbf16> to vector<8x512xbf16>
    %63 = arith.extf %62 : vector<8x512xbf16> to vector<8x512xf32>
    %64 = arith.select %9, %58, %59 : vector<8x512xi1>, vector<8x512xf32>
    %65 = arith.addf %63, %64 : vector<8x512xf32>
    %66 = vector.extract_strided_slice %65 {offsets = [0, 0], sizes = [8, 128], strides = [1, 1]} : vector<8x512xf32> to vector<8x128xf32>
    %cst_28 = arith.constant 5.000000e-01 : f32
    %67 = vector.broadcast %cst_28 : f32 to vector<8x128xf32>
    %68 = arith.mulf %67, %66 : vector<8x128xf32>
    %69 = math.tanh %68 : vector<8x128xf32>
    %cst_29 = arith.constant 5.000000e-01 : f32
    %70 = vector.broadcast %cst_29 : f32 to vector<8x128xf32>
    %71 = arith.mulf %70, %69 : vector<8x128xf32>
    %cst_30 = arith.constant 5.000000e-01 : f32
    %72 = vector.broadcast %cst_30 : f32 to vector<8x128xf32>
    %73 = arith.addf %71, %72 : vector<8x128xf32>
    %74 = vector.extract_strided_slice %65 {offsets = [0, 128], sizes = [8, 128], strides = [1, 1]} : vector<8x512xf32> to vector<8x128xf32>
    %cst_31 = arith.constant 5.000000e-01 : f32
    %75 = vector.broadcast %cst_31 : f32 to vector<8x128xf32>
    %76 = arith.mulf %75, %74 : vector<8x128xf32>
    %77 = math.tanh %76 : vector<8x128xf32>
    %cst_32 = arith.constant 5.000000e-01 : f32
    %78 = vector.broadcast %cst_32 : f32 to vector<8x128xf32>
    %79 = arith.mulf %78, %77 : vector<8x128xf32>
    %cst_33 = arith.constant 5.000000e-01 : f32
    %80 = vector.broadcast %cst_33 : f32 to vector<8x128xf32>
    %81 = arith.addf %79, %80 : vector<8x128xf32>
    %82 = vector.extract_strided_slice %65 {offsets = [0, 256], sizes = [8, 128], strides = [1, 1]} : vector<8x512xf32> to vector<8x128xf32>
    %83 = math.tanh %82 : vector<8x128xf32>
    %84 = vector.extract_strided_slice %65 {offsets = [0, 384], sizes = [8, 128], strides = [1, 1]} : vector<8x512xf32> to vector<8x128xf32>
    %cst_34 = arith.constant 5.000000e-01 : f32
    %85 = vector.broadcast %cst_34 : f32 to vector<8x128xf32>
    %86 = arith.mulf %85, %84 : vector<8x128xf32>
    %87 = math.tanh %86 : vector<8x128xf32>
    %cst_35 = arith.constant 5.000000e-01 : f32
    %88 = vector.broadcast %cst_35 : f32 to vector<8x128xf32>
    %89 = arith.mulf %88, %87 : vector<8x128xf32>
    %cst_36 = arith.constant 5.000000e-01 : f32
    %90 = vector.broadcast %cst_36 : f32 to vector<8x128xf32>
    %91 = arith.addf %89, %90 : vector<8x128xf32>
    %92 = arith.mulf %81, %49 : vector<8x128xf32>
    %93 = arith.mulf %73, %83 : vector<8x128xf32>
    %94 = arith.addf %92, %93 : vector<8x128xf32>
    %95 = math.tanh %94 : vector<8x128xf32>
    %96 = arith.mulf %91, %95 : vector<8x128xf32>
    %97 = arith.truncf %96 : vector<8x128xf32> to vector<8x128xbf16>
    %98 = arith.index_cast %c1_i32 : i32 to index
    %c0_37 = arith.constant 0 : index
    %c0_38 = arith.constant 0 : index
    %99 = vector.load %arg3[%98, %c0_37, %c0_38] : memref<8x8x128xbf16, #tpu.memory_space<vmem>>, vector<1x8x128xbf16>
    %100 = vector.shape_cast %99 : vector<1x8x128xbf16> to vector<8x128xbf16>
    %101 = vector.shape_cast %97 : vector<8x128xbf16> to vector<1x8x128xbf16>
    tpu.vector_store %arg3[%98, %c0_37, %c0_38], %101 {strides = array<i32>} : memref<8x8x128xbf16, #tpu.memory_space<vmem>>, vector<1x8x128xbf16>,
    %c2_i32 = arith.constant 2 : i32
    %102 = arith.truncf %96 : vector<8x128xf32> to vector<8x128xbf16>
    %cst_39 = arith.constant dense<0.000000e+00> : vector<8x512xf32>
    %103 = tpu.matmul %102, %4, %cst_39 {dimension_numbers = #tpu.dot_dimension_numbers<[1], [0], [0], [1], [0, 0, 1, 1], [], []>} : vector<8x128xbf16>, vector<128x512xbf16>, vector<8x512xf32> -> vector<8x512xf32>
    %cst_40 = arith.constant dense<0.000000e+00> : vector<8x512xf32>
    %104 = tpu.matmul %102, %6, %cst_40 {dimension_numbers = #tpu.dot_dimension_numbers<[1], [0], [0], [1], [0, 0, 1, 1], [], []>} : vector<8x128xbf16>, vector<128x512xbf16>, vector<8x512xf32> -> vector<8x512xf32>
    %105 = arith.index_cast %c2_i32 : i32 to index
    %c0_41 = arith.constant 0 : index
    %c0_42 = arith.constant 0 : index
    %106 = vector.load %arg1[%105, %c0_41, %c0_42] : memref<8x8x512xbf16, #tpu.memory_space<vmem>>, vector<1x8x512xbf16>
    %107 = vector.shape_cast %106 : vector<1x8x512xbf16> to vector<8x512xbf16>
    %108 = arith.extf %107 : vector<8x512xbf16> to vector<8x512xf32>
    %109 = arith.select %9, %103, %104 : vector<8x512xi1>, vector<8x512xf32>
    %110 = arith.addf %108, %109 : vector<8x512xf32>
    %111 = vector.extract_strided_slice %110 {offsets = [0, 0], sizes = [8, 128], strides = [1, 1]} : vector<8x512xf32> to vector<8x128xf32>
    %cst_43 = arith.constant 5.000000e-01 : f32
    %112 = vector.broadcast %cst_43 : f32 to vector<8x128xf32>
    %113 = arith.mulf %112, %111 : vector<8x128xf32>
    %114 = math.tanh %113 : vector<8x128xf32>
    %cst_44 = arith.constant 5.000000e-01 : f32
    %115 = vector.broadcast %cst_44 : f32 to vector<8x128xf32>
    %116 = arith.mulf %115, %114 : vector<8x128xf32>
    %cst_45 = arith.constant 5.000000e-01 : f32
    %117 = vector.broadcast %cst_45 : f32 to vector<8x128xf32>
    %118 = arith.addf %116, %117 : vector<8x128xf32>
    %119 = vector.extract_strided_slice %110 {offsets = [0, 128], sizes = [8, 128], strides = [1, 1]} : vector<8x512xf32> to vector<8x128xf32>
    %cst_46 = arith.constant 5.000000e-01 : f32
    %120 = vector.broadcast %cst_46 : f32 to vector<8x128xf32>
    %121 = arith.mulf %120, %119 : vector<8x128xf32>
    %122 = math.tanh %121 : vector<8x128xf32>
    %cst_47 = arith.constant 5.000000e-01 : f32
    %123 = vector.broadcast %cst_47 : f32 to vector<8x128xf32>
    %124 = arith.mulf %123, %122 : vector<8x128xf32>
    %cst_48 = arith.constant 5.000000e-01 : f32
    %125 = vector.broadcast %cst_48 : f32 to vector<8x128xf32>
    %126 = arith.addf %124, %125 : vector<8x128xf32>
    %127 = vector.extract_strided_slice %110 {offsets = [0, 256], sizes = [8, 128], strides = [1, 1]} : vector<8x512xf32> to vector<8x128xf32>
    %128 = math.tanh %127 : vector<8x128xf32>
    %129 = vector.extract_strided_slice %110 {offsets = [0, 384], sizes = [8, 128], strides = [1, 1]} : vector<8x512xf32> to vector<8x128xf32>
    %cst_49 = arith.constant 5.000000e-01 : f32
    %130 = vector.broadcast %cst_49 : f32 to vector<8x128xf32>
    %131 = arith.mulf %130, %129 : vector<8x128xf32>
    %132 = math.tanh %131 : vector<8x128xf32>
    %cst_50 = arith.constant 5.000000e-01 : f32
    %133 = vector.broadcast %cst_50 : f32 to vector<8x128xf32>
    %134 = arith.mulf %133, %132 : vector<8x128xf32>
    %cst_51 = arith.constant 5.000000e-01 : f32
    %135 = vector.broadcast %cst_51 : f32 to vector<8x128xf32>
    %136 = arith.addf %134, %135 : vector<8x128xf32>
    %137 = arith.mulf %126, %94 : vector<8x128xf32>
    %138 = arith.mulf %118, %128 : vector<8x128xf32>
    %139 = arith.addf %137, %138 : vector<8x128xf32>
    %140 = math.tanh %139 : vector<8x128xf32>
    %141 = arith.mulf %136, %140 : vector<8x128xf32>
    %142 = arith.truncf %141 : vector<8x128xf32> to vector<8x128xbf16>
    %143 = arith.index_cast %c2_i32 : i32 to index
    %c0_52 = arith.constant 0 : index
    %c0_53 = arith.constant 0 : index
    %144 = vector.load %arg3[%143, %c0_52, %c0_53] : memref<8x8x128xbf16, #tpu.memory_space<vmem>>, vector<1x8x128xbf16>
    %145 = vector.shape_cast %144 : vector<1x8x128xbf16> to vector<8x128xbf16>
    %146 = vector.shape_cast %142 : vector<8x128xbf16> to vector<1x8x128xbf16>
    tpu.vector_store %arg3[%143, %c0_52, %c0_53], %146 {strides = array<i32>} : memref<8x8x128xbf16, #tpu.memory_space<vmem>>, vector<1x8x128xbf16>,
    %c3_i32 = arith.constant 3 : i32
    %147 = arith.truncf %141 : vector<8x128xf32> to vector<8x128xbf16>
    %cst_54 = arith.constant dense<0.000000e+00> : vector<8x512xf32>
    %148 = tpu.matmul %147, %4, %cst_54 {dimension_numbers = #tpu.dot_dimension_numbers<[1], [0], [0], [1], [0, 0, 1, 1], [], []>} : vector<8x128xbf16>, vector<128x512xbf16>, vector<8x512xf32> -> vector<8x512xf32>
    %cst_55 = arith.constant dense<0.000000e+00> : vector<8x512xf32>
    %149 = tpu.matmul %147, %6, %cst_55 {dimension_numbers = #tpu.dot_dimension_numbers<[1], [0], [0], [1], [0, 0, 1, 1], [], []>} : vector<8x128xbf16>, vector<128x512xbf16>, vector<8x512xf32> -> vector<8x512xf32>
    %150 = arith.index_cast %c3_i32 : i32 to index
    %c0_56 = arith.constant 0 : index
    %c0_57 = arith.constant 0 : index
    %151 = vector.load %arg1[%150, %c0_56, %c0_57] : memref<8x8x512xbf16, #tpu.memory_space<vmem>>, vector<1x8x512xbf16>
    %152 = vector.shape_cast %151 : vector<1x8x512xbf16> to vector<8x512xbf16>
    %153 = arith.extf %152 : vector<8x512xbf16> to vector<8x512xf32>
    %154 = arith.select %9, %148, %149 : vector<8x512xi1>, vector<8x512xf32>
    %155 = arith.addf %153, %154 : vector<8x512xf32>
    %156 = vector.extract_strided_slice %155 {offsets = [0, 0], sizes = [8, 128], strides = [1, 1]} : vector<8x512xf32> to vector<8x128xf32>
    %cst_58 = arith.constant 5.000000e-01 : f32
    %157 = vector.broadcast %cst_58 : f32 to vector<8x128xf32>
    %158 = arith.mulf %157, %156 : vector<8x128xf32>
    %159 = math.tanh %158 : vector<8x128xf32>
    %cst_59 = arith.constant 5.000000e-01 : f32
    %160 = vector.broadcast %cst_59 : f32 to vector<8x128xf32>
    %161 = arith.mulf %160, %159 : vector<8x128xf32>
    %cst_60 = arith.constant 5.000000e-01 : f32
    %162 = vector.broadcast %cst_60 : f32 to vector<8x128xf32>
    %163 = arith.addf %161, %162 : vector<8x128xf32>
    %164 = vector.extract_strided_slice %155 {offsets = [0, 128], sizes = [8, 128], strides = [1, 1]} : vector<8x512xf32> to vector<8x128xf32>
    %cst_61 = arith.constant 5.000000e-01 : f32
    %165 = vector.broadcast %cst_61 : f32 to vector<8x128xf32>
    %166 = arith.mulf %165, %164 : vector<8x128xf32>
    %167 = math.tanh %166 : vector<8x128xf32>
    %cst_62 = arith.constant 5.000000e-01 : f32
    %168 = vector.broadcast %cst_62 : f32 to vector<8x128xf32>
    %169 = arith.mulf %168, %167 : vector<8x128xf32>
    %cst_63 = arith.constant 5.000000e-01 : f32
    %170 = vector.broadcast %cst_63 : f32 to vector<8x128xf32>
    %171 = arith.addf %169, %170 : vector<8x128xf32>
    %172 = vector.extract_strided_slice %155 {offsets = [0, 256], sizes = [8, 128], strides = [1, 1]} : vector<8x512xf32> to vector<8x128xf32>
    %173 = math.tanh %172 : vector<8x128xf32>
    %174 = vector.extract_strided_slice %155 {offsets = [0, 384], sizes = [8, 128], strides = [1, 1]} : vector<8x512xf32> to vector<8x128xf32>
    %cst_64 = arith.constant 5.000000e-01 : f32
    %175 = vector.broadcast %cst_64 : f32 to vector<8x128xf32>
    %176 = arith.mulf %175, %174 : vector<8x128xf32>
    %177 = math.tanh %176 : vector<8x128xf32>
    %cst_65 = arith.constant 5.000000e-01 : f32
    %178 = vector.broadcast %cst_65 : f32 to vector<8x128xf32>
    %179 = arith.mulf %178, %177 : vector<8x128xf32>
    %cst_66 = arith.constant 5.000000e-01 : f32
    %180 = vector.broadcast %cst_66 : f32 to vector<8x128xf32>
    %181 = arith.addf %179, %180 : vector<8x128xf32>
    %182 = arith.mulf %171, %139 : vector<8x128xf32>
    %183 = arith.mulf %163, %173 : vector<8x128xf32>
    %184 = arith.addf %182, %183 : vector<8x128xf32>
    %185 = math.tanh %184 : vector<8x128xf32>
    %186 = arith.mulf %181, %185 : vector<8x128xf32>
    %187 = arith.truncf %186 : vector<8x128xf32> to vector<8x128xbf16>
    %188 = arith.index_cast %c3_i32 : i32 to index
    %c0_67 = arith.constant 0 : index
    %c0_68 = arith.constant 0 : index
    %189 = vector.load %arg3[%188, %c0_67, %c0_68] : memref<8x8x128xbf16, #tpu.memory_space<vmem>>, vector<1x8x128xbf16>
    %190 = vector.shape_cast %189 : vector<1x8x128xbf16> to vector<8x128xbf16>
    %191 = vector.shape_cast %187 : vector<8x128xbf16> to vector<1x8x128xbf16>
    tpu.vector_store %arg3[%188, %c0_67, %c0_68], %191 {strides = array<i32>} : memref<8x8x128xbf16, #tpu.memory_space<vmem>>, vector<1x8x128xbf16>,
    %c4_i32_69 = arith.constant 4 : i32
    %192 = arith.truncf %186 : vector<8x128xf32> to vector<8x128xbf16>
    %cst_70 = arith.constant dense<0.000000e+00> : vector<8x512xf32>
    %193 = tpu.matmul %192, %4, %cst_70 {dimension_numbers = #tpu.dot_dimension_numbers<[1], [0], [0], [1], [0, 0, 1, 1], [], []>} : vector<8x128xbf16>, vector<128x512xbf16>, vector<8x512xf32> -> vector<8x512xf32>
    %cst_71 = arith.constant dense<0.000000e+00> : vector<8x512xf32>
    %194 = tpu.matmul %192, %6, %cst_71 {dimension_numbers = #tpu.dot_dimension_numbers<[1], [0], [0], [1], [0, 0, 1, 1], [], []>} : vector<8x128xbf16>, vector<128x512xbf16>, vector<8x512xf32> -> vector<8x512xf32>
    %195 = arith.index_cast %c4_i32_69 : i32 to index
    %c0_72 = arith.constant 0 : index
    %c0_73 = arith.constant 0 : index
    %196 = vector.load %arg1[%195, %c0_72, %c0_73] : memref<8x8x512xbf16, #tpu.memory_space<vmem>>, vector<1x8x512xbf16>
    %197 = vector.shape_cast %196 : vector<1x8x512xbf16> to vector<8x512xbf16>
    %198 = arith.extf %197 : vector<8x512xbf16> to vector<8x512xf32>
    %199 = arith.select %9, %193, %194 : vector<8x512xi1>, vector<8x512xf32>
    %200 = arith.addf %198, %199 : vector<8x512xf32>
    %201 = vector.extract_strided_slice %200 {offsets = [0, 0], sizes = [8, 128], strides = [1, 1]} : vector<8x512xf32> to vector<8x128xf32>
    %cst_74 = arith.constant 5.000000e-01 : f32
    %202 = vector.broadcast %cst_74 : f32 to vector<8x128xf32>
    %203 = arith.mulf %202, %201 : vector<8x128xf32>
    %204 = math.tanh %203 : vector<8x128xf32>
    %cst_75 = arith.constant 5.000000e-01 : f32
    %205 = vector.broadcast %cst_75 : f32 to vector<8x128xf32>
    %206 = arith.mulf %205, %204 : vector<8x128xf32>
    %cst_76 = arith.constant 5.000000e-01 : f32
    %207 = vector.broadcast %cst_76 : f32 to vector<8x128xf32>
    %208 = arith.addf %206, %207 : vector<8x128xf32>
    %209 = vector.extract_strided_slice %200 {offsets = [0, 128], sizes = [8, 128], strides = [1, 1]} : vector<8x512xf32> to vector<8x128xf32>
    %cst_77 = arith.constant 5.000000e-01 : f32
    %210 = vector.broadcast %cst_77 : f32 to vector<8x128xf32>
    %211 = arith.mulf %210, %209 : vector<8x128xf32>
    %212 = math.tanh %211 : vector<8x128xf32>
    %cst_78 = arith.constant 5.000000e-01 : f32
    %213 = vector.broadcast %cst_78 : f32 to vector<8x128xf32>
    %214 = arith.mulf %213, %212 : vector<8x128xf32>
    %cst_79 = arith.constant 5.000000e-01 : f32
    %215 = vector.broadcast %cst_79 : f32 to vector<8x128xf32>
    %216 = arith.addf %214, %215 : vector<8x128xf32>
    %217 = vector.extract_strided_slice %200 {offsets = [0, 256], sizes = [8, 128], strides = [1, 1]} : vector<8x512xf32> to vector<8x128xf32>
    %218 = math.tanh %217 : vector<8x128xf32>
    %219 = vector.extract_strided_slice %200 {offsets = [0, 384], sizes = [8, 128], strides = [1, 1]} : vector<8x512xf32> to vector<8x128xf32>
    %cst_80 = arith.constant 5.000000e-01 : f32
    %220 = vector.broadcast %cst_80 : f32 to vector<8x128xf32>
    %221 = arith.mulf %220, %219 : vector<8x128xf32>
    %222 = math.tanh %221 : vector<8x128xf32>
    %cst_81 = arith.constant 5.000000e-01 : f32
    %223 = vector.broadcast %cst_81 : f32 to vector<8x128xf32>
    %224 = arith.mulf %223, %222 : vector<8x128xf32>
    %cst_82 = arith.constant 5.000000e-01 : f32
    %225 = vector.broadcast %cst_82 : f32 to vector<8x128xf32>
    %226 = arith.addf %224, %225 : vector<8x128xf32>
    %227 = arith.mulf %216, %184 : vector<8x128xf32>
    %228 = arith.mulf %208, %218 : vector<8x128xf32>
    %229 = arith.addf %227, %228 : vector<8x128xf32>
    %230 = math.tanh %229 : vector<8x128xf32>
    %231 = arith.mulf %226, %230 : vector<8x128xf32>
    %232 = arith.truncf %231 : vector<8x128xf32> to vector<8x128xbf16>
    %233 = arith.index_cast %c4_i32_69 : i32 to index
    %c0_83 = arith.constant 0 : index
    %c0_84 = arith.constant 0 : index
    %234 = vector.load %arg3[%233, %c0_83, %c0_84] : memref<8x8x128xbf16, #tpu.memory_space<vmem>>, vector<1x8x128xbf16>
    %235 = vector.shape_cast %234 : vector<1x8x128xbf16> to vector<8x128xbf16>
    %236 = vector.shape_cast %232 : vector<8x128xbf16> to vector<1x8x128xbf16>
    tpu.vector_store %arg3[%233, %c0_83, %c0_84], %236 {strides = array<i32>} : memref<8x8x128xbf16, #tpu.memory_space<vmem>>, vector<1x8x128xbf16>,
    %c5_i32 = arith.constant 5 : i32
    %237 = arith.truncf %231 : vector<8x128xf32> to vector<8x128xbf16>
    %cst_85 = arith.constant dense<0.000000e+00> : vector<8x512xf32>
    %238 = tpu.matmul %237, %4, %cst_85 {dimension_numbers = #tpu.dot_dimension_numbers<[1], [0], [0], [1], [0, 0, 1, 1], [], []>} : vector<8x128xbf16>, vector<128x512xbf16>, vector<8x512xf32> -> vector<8x512xf32>
    %cst_86 = arith.constant dense<0.000000e+00> : vector<8x512xf32>
    %239 = tpu.matmul %237, %6, %cst_86 {dimension_numbers = #tpu.dot_dimension_numbers<[1], [0], [0], [1], [0, 0, 1, 1], [], []>} : vector<8x128xbf16>, vector<128x512xbf16>, vector<8x512xf32> -> vector<8x512xf32>
    %240 = arith.index_cast %c5_i32 : i32 to index
    %c0_87 = arith.constant 0 : index
    %c0_88 = arith.constant 0 : index
    %241 = vector.load %arg1[%240, %c0_87, %c0_88] : memref<8x8x512xbf16, #tpu.memory_space<vmem>>, vector<1x8x512xbf16>
    %242 = vector.shape_cast %241 : vector<1x8x512xbf16> to vector<8x512xbf16>
    %243 = arith.extf %242 : vector<8x512xbf16> to vector<8x512xf32>
    %244 = arith.select %9, %238, %239 : vector<8x512xi1>, vector<8x512xf32>
    %245 = arith.addf %243, %244 : vector<8x512xf32>
    %246 = vector.extract_strided_slice %245 {offsets = [0, 0], sizes = [8, 128], strides = [1, 1]} : vector<8x512xf32> to vector<8x128xf32>
    %cst_89 = arith.constant 5.000000e-01 : f32
    %247 = vector.broadcast %cst_89 : f32 to vector<8x128xf32>
    %248 = arith.mulf %247, %246 : vector<8x128xf32>
    %249 = math.tanh %248 : vector<8x128xf32>
    %cst_90 = arith.constant 5.000000e-01 : f32
    %250 = vector.broadcast %cst_90 : f32 to vector<8x128xf32>
    %251 = arith.mulf %250, %249 : vector<8x128xf32>
    %cst_91 = arith.constant 5.000000e-01 : f32
    %252 = vector.broadcast %cst_91 : f32 to vector<8x128xf32>
    %253 = arith.addf %251, %252 : vector<8x128xf32>
    %254 = vector.extract_strided_slice %245 {offsets = [0, 128], sizes = [8, 128], strides = [1, 1]} : vector<8x512xf32> to vector<8x128xf32>
    %cst_92 = arith.constant 5.000000e-01 : f32
    %255 = vector.broadcast %cst_92 : f32 to vector<8x128xf32>
    %256 = arith.mulf %255, %254 : vector<8x128xf32>
    %257 = math.tanh %256 : vector<8x128xf32>
    %cst_93 = arith.constant 5.000000e-01 : f32
    %258 = vector.broadcast %cst_93 : f32 to vector<8x128xf32>
    %259 = arith.mulf %258, %257 : vector<8x128xf32>
    %cst_94 = arith.constant 5.000000e-01 : f32
    %260 = vector.broadcast %cst_94 : f32 to vector<8x128xf32>
    %261 = arith.addf %259, %260 : vector<8x128xf32>
    %262 = vector.extract_strided_slice %245 {offsets = [0, 256], sizes = [8, 128], strides = [1, 1]} : vector<8x512xf32> to vector<8x128xf32>
    %263 = math.tanh %262 : vector<8x128xf32>
    %264 = vector.extract_strided_slice %245 {offsets = [0, 384], sizes = [8, 128], strides = [1, 1]} : vector<8x512xf32> to vector<8x128xf32>
    %cst_95 = arith.constant 5.000000e-01 : f32
    %265 = vector.broadcast %cst_95 : f32 to vector<8x128xf32>
    %266 = arith.mulf %265, %264 : vector<8x128xf32>
    %267 = math.tanh %266 : vector<8x128xf32>
    %cst_96 = arith.constant 5.000000e-01 : f32
    %268 = vector.broadcast %cst_96 : f32 to vector<8x128xf32>
    %269 = arith.mulf %268, %267 : vector<8x128xf32>
    %cst_97 = arith.constant 5.000000e-01 : f32
    %270 = vector.broadcast %cst_97 : f32 to vector<8x128xf32>
    %271 = arith.addf %269, %270 : vector<8x128xf32>
    %272 = arith.mulf %261, %229 : vector<8x128xf32>
    %273 = arith.mulf %253, %263 : vector<8x128xf32>
    %274 = arith.addf %272, %273 : vector<8x128xf32>
    %275 = math.tanh %274 : vector<8x128xf32>
    %276 = arith.mulf %271, %275 : vector<8x128xf32>
    %277 = arith.truncf %276 : vector<8x128xf32> to vector<8x128xbf16>
    %278 = arith.index_cast %c5_i32 : i32 to index
    %c0_98 = arith.constant 0 : index
    %c0_99 = arith.constant 0 : index
    %279 = vector.load %arg3[%278, %c0_98, %c0_99] : memref<8x8x128xbf16, #tpu.memory_space<vmem>>, vector<1x8x128xbf16>
    %280 = vector.shape_cast %279 : vector<1x8x128xbf16> to vector<8x128xbf16>
    %281 = vector.shape_cast %277 : vector<8x128xbf16> to vector<1x8x128xbf16>
    tpu.vector_store %arg3[%278, %c0_98, %c0_99], %281 {strides = array<i32>} : memref<8x8x128xbf16, #tpu.memory_space<vmem>>, vector<1x8x128xbf16>,
    %c6_i32 = arith.constant 6 : i32
    %282 = arith.truncf %276 : vector<8x128xf32> to vector<8x128xbf16>
    %cst_100 = arith.constant dense<0.000000e+00> : vector<8x512xf32>
    %283 = tpu.matmul %282, %4, %cst_100 {dimension_numbers = #tpu.dot_dimension_numbers<[1], [0], [0], [1], [0, 0, 1, 1], [], []>} : vector<8x128xbf16>, vector<128x512xbf16>, vector<8x512xf32> -> vector<8x512xf32>
    %cst_101 = arith.constant dense<0.000000e+00> : vector<8x512xf32>
    %284 = tpu.matmul %282, %6, %cst_101 {dimension_numbers = #tpu.dot_dimension_numbers<[1], [0], [0], [1], [0, 0, 1, 1], [], []>} : vector<8x128xbf16>, vector<128x512xbf16>, vector<8x512xf32> -> vector<8x512xf32>
    %285 = arith.index_cast %c6_i32 : i32 to index
    %c0_102 = arith.constant 0 : index
    %c0_103 = arith.constant 0 : index
    %286 = vector.load %arg1[%285, %c0_102, %c0_103] : memref<8x8x512xbf16, #tpu.memory_space<vmem>>, vector<1x8x512xbf16>
    %287 = vector.shape_cast %286 : vector<1x8x512xbf16> to vector<8x512xbf16>
    %288 = arith.extf %287 : vector<8x512xbf16> to vector<8x512xf32>
    %289 = arith.select %9, %283, %284 : vector<8x512xi1>, vector<8x512xf32>
    %290 = arith.addf %288, %289 : vector<8x512xf32>
    %291 = vector.extract_strided_slice %290 {offsets = [0, 0], sizes = [8, 128], strides = [1, 1]} : vector<8x512xf32> to vector<8x128xf32>
    %cst_104 = arith.constant 5.000000e-01 : f32
    %292 = vector.broadcast %cst_104 : f32 to vector<8x128xf32>
    %293 = arith.mulf %292, %291 : vector<8x128xf32>
    %294 = math.tanh %293 : vector<8x128xf32>
    %cst_105 = arith.constant 5.000000e-01 : f32
    %295 = vector.broadcast %cst_105 : f32 to vector<8x128xf32>
    %296 = arith.mulf %295, %294 : vector<8x128xf32>
    %cst_106 = arith.constant 5.000000e-01 : f32
    %297 = vector.broadcast %cst_106 : f32 to vector<8x128xf32>
    %298 = arith.addf %296, %297 : vector<8x128xf32>
    %299 = vector.extract_strided_slice %290 {offsets = [0, 128], sizes = [8, 128], strides = [1, 1]} : vector<8x512xf32> to vector<8x128xf32>
    %cst_107 = arith.constant 5.000000e-01 : f32
    %300 = vector.broadcast %cst_107 : f32 to vector<8x128xf32>
    %301 = arith.mulf %300, %299 : vector<8x128xf32>
    %302 = math.tanh %301 : vector<8x128xf32>
    %cst_108 = arith.constant 5.000000e-01 : f32
    %303 = vector.broadcast %cst_108 : f32 to vector<8x128xf32>
    %304 = arith.mulf %303, %302 : vector<8x128xf32>
    %cst_109 = arith.constant 5.000000e-01 : f32
    %305 = vector.broadcast %cst_109 : f32 to vector<8x128xf32>
    %306 = arith.addf %304, %305 : vector<8x128xf32>
    %307 = vector.extract_strided_slice %290 {offsets = [0, 256], sizes = [8, 128], strides = [1, 1]} : vector<8x512xf32> to vector<8x128xf32>
    %308 = math.tanh %307 : vector<8x128xf32>
    %309 = vector.extract_strided_slice %290 {offsets = [0, 384], sizes = [8, 128], strides = [1, 1]} : vector<8x512xf32> to vector<8x128xf32>
    %cst_110 = arith.constant 5.000000e-01 : f32
    %310 = vector.broadcast %cst_110 : f32 to vector<8x128xf32>
    %311 = arith.mulf %310, %309 : vector<8x128xf32>
    %312 = math.tanh %311 : vector<8x128xf32>
    %cst_111 = arith.constant 5.000000e-01 : f32
    %313 = vector.broadcast %cst_111 : f32 to vector<8x128xf32>
    %314 = arith.mulf %313, %312 : vector<8x128xf32>
    %cst_112 = arith.constant 5.000000e-01 : f32
    %315 = vector.broadcast %cst_112 : f32 to vector<8x128xf32>
    %316 = arith.addf %314, %315 : vector<8x128xf32>
    %317 = arith.mulf %306, %274 : vector<8x128xf32>
    %318 = arith.mulf %298, %308 : vector<8x128xf32>
    %319 = arith.addf %317, %318 : vector<8x128xf32>
    %320 = math.tanh %319 : vector<8x128xf32>
    %321 = arith.mulf %316, %320 : vector<8x128xf32>
    %322 = arith.truncf %321 : vector<8x128xf32> to vector<8x128xbf16>
    %323 = arith.index_cast %c6_i32 : i32 to index
    %c0_113 = arith.constant 0 : index
    %c0_114 = arith.constant 0 : index
    %324 = vector.load %arg3[%323, %c0_113, %c0_114] : memref<8x8x128xbf16, #tpu.memory_space<vmem>>, vector<1x8x128xbf16>
    %325 = vector.shape_cast %324 : vector<1x8x128xbf16> to vector<8x128xbf16>
    %326 = vector.shape_cast %322 : vector<8x128xbf16> to vector<1x8x128xbf16>
    tpu.vector_store %arg3[%323, %c0_113, %c0_114], %326 {strides = array<i32>} : memref<8x8x128xbf16, #tpu.memory_space<vmem>>, vector<1x8x128xbf16>,
    %c7_i32 = arith.constant 7 : i32
    %327 = arith.truncf %321 : vector<8x128xf32> to vector<8x128xbf16>
    %cst_115 = arith.constant dense<0.000000e+00> : vector<8x512xf32>
    %328 = tpu.matmul %327, %4, %cst_115 {dimension_numbers = #tpu.dot_dimension_numbers<[1], [0], [0], [1], [0, 0, 1, 1], [], []>} : vector<8x128xbf16>, vector<128x512xbf16>, vector<8x512xf32> -> vector<8x512xf32>
    %cst_116 = arith.constant dense<0.000000e+00> : vector<8x512xf32>
    %329 = tpu.matmul %327, %6, %cst_116 {dimension_numbers = #tpu.dot_dimension_numbers<[1], [0], [0], [1], [0, 0, 1, 1], [], []>} : vector<8x128xbf16>, vector<128x512xbf16>, vector<8x512xf32> -> vector<8x512xf32>
    %330 = arith.index_cast %c7_i32 : i32 to index
    %c0_117 = arith.constant 0 : index
    %c0_118 = arith.constant 0 : index
    %331 = vector.load %arg1[%330, %c0_117, %c0_118] : memref<8x8x512xbf16, #tpu.memory_space<vmem>>, vector<1x8x512xbf16>
    %332 = vector.shape_cast %331 : vector<1x8x512xbf16> to vector<8x512xbf16>
    %333 = arith.extf %332 : vector<8x512xbf16> to vector<8x512xf32>
    %334 = arith.select %9, %328, %329 : vector<8x512xi1>, vector<8x512xf32>
    %335 = arith.addf %333, %334 : vector<8x512xf32>
    %336 = vector.extract_strided_slice %335 {offsets = [0, 0], sizes = [8, 128], strides = [1, 1]} : vector<8x512xf32> to vector<8x128xf32>
    %cst_119 = arith.constant 5.000000e-01 : f32
    %337 = vector.broadcast %cst_119 : f32 to vector<8x128xf32>
    %338 = arith.mulf %337, %336 : vector<8x128xf32>
    %339 = math.tanh %338 : vector<8x128xf32>
    %cst_120 = arith.constant 5.000000e-01 : f32
    %340 = vector.broadcast %cst_120 : f32 to vector<8x128xf32>
    %341 = arith.mulf %340, %339 : vector<8x128xf32>
    %cst_121 = arith.constant 5.000000e-01 : f32
    %342 = vector.broadcast %cst_121 : f32 to vector<8x128xf32>
    %343 = arith.addf %341, %342 : vector<8x128xf32>
    %344 = vector.extract_strided_slice %335 {offsets = [0, 128], sizes = [8, 128], strides = [1, 1]} : vector<8x512xf32> to vector<8x128xf32>
    %cst_122 = arith.constant 5.000000e-01 : f32
    %345 = vector.broadcast %cst_122 : f32 to vector<8x128xf32>
    %346 = arith.mulf %345, %344 : vector<8x128xf32>
    %347 = math.tanh %346 : vector<8x128xf32>
    %cst_123 = arith.constant 5.000000e-01 : f32
    %348 = vector.broadcast %cst_123 : f32 to vector<8x128xf32>
    %349 = arith.mulf %348, %347 : vector<8x128xf32>
    %cst_124 = arith.constant 5.000000e-01 : f32
    %350 = vector.broadcast %cst_124 : f32 to vector<8x128xf32>
    %351 = arith.addf %349, %350 : vector<8x128xf32>
    %352 = vector.extract_strided_slice %335 {offsets = [0, 256], sizes = [8, 128], strides = [1, 1]} : vector<8x512xf32> to vector<8x128xf32>
    %353 = math.tanh %352 : vector<8x128xf32>
    %354 = vector.extract_strided_slice %335 {offsets = [0, 384], sizes = [8, 128], strides = [1, 1]} : vector<8x512xf32> to vector<8x128xf32>
    %cst_125 = arith.constant 5.000000e-01 : f32
    %355 = vector.broadcast %cst_125 : f32 to vector<8x128xf32>
    %356 = arith.mulf %355, %354 : vector<8x128xf32>
    %357 = math.tanh %356 : vector<8x128xf32>
    %cst_126 = arith.constant 5.000000e-01 : f32
    %358 = vector.broadcast %cst_126 : f32 to vector<8x128xf32>
    %359 = arith.mulf %358, %357 : vector<8x128xf32>
    %cst_127 = arith.constant 5.000000e-01 : f32
    %360 = vector.broadcast %cst_127 : f32 to vector<8x128xf32>
    %361 = arith.addf %359, %360 : vector<8x128xf32>
    %362 = arith.mulf %351, %319 : vector<8x128xf32>
    %363 = arith.mulf %343, %353 : vector<8x128xf32>
    %364 = arith.addf %362, %363 : vector<8x128xf32>
    %365 = math.tanh %364 : vector<8x128xf32>
    %366 = arith.mulf %361, %365 : vector<8x128xf32>
    %367 = arith.truncf %366 : vector<8x128xf32> to vector<8x128xbf16>
    %368 = arith.index_cast %c7_i32 : i32 to index
    %c0_128 = arith.constant 0 : index
    %c0_129 = arith.constant 0 : index
    %369 = vector.load %arg3[%368, %c0_128, %c0_129] : memref<8x8x128xbf16, #tpu.memory_space<vmem>>, vector<1x8x128xbf16>
    %370 = vector.shape_cast %369 : vector<1x8x128xbf16> to vector<8x128xbf16>
    %371 = vector.shape_cast %367 : vector<8x128xbf16> to vector<1x8x128xbf16>
    tpu.vector_store %arg3[%368, %c0_128, %c0_129], %371 {strides = array<i32>} : memref<8x8x128xbf16, #tpu.memory_space<vmem>>, vector<1x8x128xbf16>,
    %c8_i32 = arith.constant 8 : i32
    %c0_130 = arith.constant 0 : index
    %c0_131 = arith.constant 0 : index
    %372 = vector.load %arg4[%c0_130, %c0_131] : memref<8x128xf32, #tpu.memory_space<vmem>>, vector<8x128xf32>
    tpu.vector_store %arg4[%c0_130, %c0_131], %366 {strides = array<i32>} : memref<8x128xf32, #tpu.memory_space<vmem>>, vector<8x128xf32>,
    %c0_132 = arith.constant 0 : index
    %c0_133 = arith.constant 0 : index
    %373 = vector.load %arg5[%c0_132, %c0_133] : memref<8x128xf32, #tpu.memory_space<vmem>>, vector<8x128xf32>
    tpu.vector_store %arg5[%c0_132, %c0_133], %364 {strides = array<i32>} : memref<8x128xf32, #tpu.memory_space<vmem>>, vector<8x128xf32>,
    return
  }
  func.func @transform_0(%arg0: i32) -> (i32, i32, i32) {
    %c0_i32 = arith.constant 0 : i32
    %c0_i32_0 = arith.constant 0 : i32
    %c0_i32_1 = arith.constant 0 : i32
    return %arg0, %c0_i32, %c0_i32_0 : i32, i32, i32
  }
  func.func @transform_1(%arg0: i32) -> (i32, i32, i32) {
    %c0_i32 = arith.constant 0 : i32
    %c0_i32_0 = arith.constant 0 : i32
    %c0_i32_1 = arith.constant 0 : i32
    %c0_i32_2 = arith.constant 0 : i32
    return %c0_i32, %c0_i32_0, %c0_i32_1 : i32, i32, i32
  }
  func.func @transform_2(%arg0: i32) -> (i32, i32, i32) {
    %c0_i32 = arith.constant 0 : i32
    %c0_i32_0 = arith.constant 0 : i32
    %c0_i32_1 = arith.constant 0 : i32
    return %arg0, %c0_i32, %c0_i32_0 : i32, i32, i32
  }
}

</mosaic_0001>

<llo_original>
// kernel: tpu_custom_call.1
$region0: #{tpu_custom_call.1}
  #allocation0 [shape = 'u32[]', space=smem, size = 0x4, offset = 0x4, fixed_abs, tag = 'smem constant byte address 0x4 - core index']
  #allocation1 [shape = 'u32[72,128]{1,0:T(1,128)}', space=vmem, size = 0x9000, scoped, tag = 'internal scratch']
  #allocation2 [shape = 'f32[8,128]{1,0:T(8,128)}', space=vmem, size = 0x1000, scoped, tag = 'scratch operand']
  #allocation3 [shape = 'f32[8,128]{1,0:T(8,128)}', space=vmem, size = 0x1000, scoped, tag = 'scratch operand']
  %s0 = inlined_call_operand.hbm [shape: bf16[8,8,512], index: 0, kind: input, shape index: {}]
  %s1 = inlined_call_operand.hbm [shape: bf16[2,128,512], index: 1, kind: input, shape index: {}]
  %s2 = inlined_call_operand.hbm [shape: bf16[8,8,128], index: 2, kind: output, shape index: {}]
  %s3 = sld [smem:[#allocation0]]
  $region30: #{tpu_custom_call.1} parent=0
    _
  %s5 = ssub.s32 1, %s3
  %s6 = scalar_select 0, %s5, %s3
  $region1: #{tpu_custom_call.1} parent=0
    #allocation4 [shape = 'u8[65536]{0}', space=vmem, size = 0x10000, scoped, tag = 'input window, operand 0, single buffered']
    #allocation5 [shape = 's32[1]{0}', space=sflag, size = 0x4, scoped, tag = 'scoped memory for tpu_custom_call.1']
    #allocation6 [shape = 's32[1]{0}', space=sflag, size = 0x4, scoped, tag = 'scoped memory for tpu_custom_call.1']
    #allocation7 [shape = 'u8[262144]{0}', space=vmem, size = 0x40000, scoped, tag = 'input window, operand 1, single buffered']
    #allocation8 [shape = 's32[1]{0}', space=sflag, size = 0x4, scoped, tag = 'scoped memory for tpu_custom_call.1']
    #allocation9 [shape = 'u8[16384]{0}', space=vmem, size = 0x4000, scoped, tag = 'output window, operand 0, single buffered']
    %7 = vsyncpa [#allocation5], 0
    %8 = vsyncpa [#allocation8], 0
    %9 = vsyncpa [#allocation6], 0
    // Predicated region
    $region2: #{tpu_custom_call.1} parent=1 // pred_check
      _
    $region3: #{tpu_custom_call.1} parent=1 // pred_check_branch
      %11 = sbr.rel (0) target = $region5
    $region4: #{tpu_custom_call.1} parent=1 // pred_region
      %13 = vsyncadd [#allocation5], 0
      %s14 = sshll.u32 %s0, 4
      %s15 = int_to_ptr.hbm [resolvable:$true] %s14
      %s16 = sshll.u32 [#allocation4], 4
      %s17 = int_to_ptr.vmem [resolvable:$true] %s16
      %22 = dma.hbm_to_vmem [thread:$0]  %s15, 2048, %s17, [#allocation5], 256, 256, 16
    $region5: #{tpu_custom_call.1} parent=1 // pred_fallthru
      _
    // Predicated region
    $region6: #{tpu_custom_call.1} parent=1 // pred_check
      _
    $region7: #{tpu_custom_call.1} parent=1 // pred_check_branch
      %24 = sbr.rel (0) target = $region9
    $region8: #{tpu_custom_call.1} parent=1 // pred_region
      %26 = vsyncadd [#allocation8], 0
      %s27 = sshll.u32 %s1, 4
      %s28 = int_to_ptr.hbm [resolvable:$true] %s27
      %s29 = sshll.u32 [#allocation7], 4
      %s30 = int_to_ptr.vmem [resolvable:$true] %s29
      %35 = dma.hbm_to_vmem [thread:$0]  %s28, 8192, %s30, [#allocation8], 256, 256, 16
    $region9: #{tpu_custom_call.1} parent=1 // pred_fallthru
      _
    // Predicated region
    $region10: #{tpu_custom_call.1} parent=1 // pred_check
      _
    $region11: #{tpu_custom_call.1} parent=1 // pred_check_branch
      %37 = sbr.rel (0) target = $region13
    $region12: #{tpu_custom_call.1} parent=1 // pred_region
      %39 = dma.done [#allocation5], 2048
    $region13: #{tpu_custom_call.1} parent=1 // pred_fallthru
      _
    // Predicated region
    $region14: #{tpu_custom_call.1} parent=1 // pred_check
      _
    $region15: #{tpu_custom_call.1} parent=1 // pred_check_branch
      %41 = sbr.rel (0) target = $region17
    $region16: #{tpu_custom_call.1} parent=1 // pred_region
      %43 = dma.done [#allocation8], 8192
    $region17: #{tpu_custom_call.1} parent=1 // pred_fallthru
      _
    %p44 = scmp.eq.s32.totalorder 0, 0
    // Predicated region
    $region18: #{tpu_custom_call.1} parent=1 // pred_check
      %p45 = pneg %p44
    $region19: #{tpu_custom_call.1} parent=1 // pred_check_branch
      %47 = sbr.rel (%p45) target = $region21
    $region20: #{tpu_custom_call.1} parent=1 // pred_region
      %48 = vst [vmem:[#allocation2] sm:$0xff] 0.0
      %49 = vst [vmem:[#allocation3] sm:$0xff] 0.0
    $region21: #{tpu_custom_call.1} parent=1 // pred_fallthru
      _
    %v50 = vld [vmem:[#allocation7] sm:$0xff]
    %v51 = vld [vmem:[#allocation7 + $0x8] sm:$0xff]
    %v52 = vld [vmem:[#allocation7 + $0x10] sm:$0xff]
    %v53 = vld [vmem:[#allocation7 + $0x18] sm:$0xff]
    %v54 = vld [vmem:[#allocation7 + $0x20] sm:$0xff]
    %v55 = vld [vmem:[#allocation7 + $0x28] sm:$0xff]
    %v56 = vld [vmem:[#allocation7 + $0x30] sm:$0xff]
    %v57 = vld [vmem:[#allocation7 + $0x38] sm:$0xff]
    %v58 = vld [vmem:[#allocation7 + $0x40] sm:$0xff]
    %v59 = vld [vmem:[#allocation7 + $0x48] sm:$0xff]
    %v60 = vld [vmem:[#allocation7 + $0x50] sm:$0xff]
    %v61 = vld [vmem:[#allocation7 + $0x58] sm:$0xff]
    %v62 = vld [vmem:[#allocation7 + $0x60] sm:$0xff]
    %v63 = vld [vmem:[#allocation7 + $0x68] sm:$0xff]
    %v64 = vld [vmem:[#allocation7 + $0x70] sm:$0xff]
    %v65 = vld [vmem:[#allocation7 + $0x78] sm:$0xff]
    %v66 = vld [vmem:[#allocation7 + $0x80] sm:$0xff]
    %v67 = vld [vmem:[#allocation7 + $0x88] sm:$0xff]
    %v68 = vld [vmem:[#allocation7 + $0x90] sm:$0xff]
    %v69 = vld [vmem:[#allocation7 + $0x98] sm:$0xff]
    %v70 = vld [vmem:[#allocation7 + $0xa0] sm:$0xff]
    %v71 = vld [vmem:[#allocation7 + $0xa8] sm:$0xff]
    %v72 = vld [vmem:[#allocation7 + $0xb0] sm:$0xff]
    %v73 = vld [vmem:[#allocation7 + $0xb8] sm:$0xff]
    %v74 = vld [vmem:[#allocation7 + $0xc0] sm:$0xff]
    %v75 = vld [vmem:[#allocation7 + $0xc8] sm:$0xff]
    %v76 = vld [vmem:[#allocation7 + $0xd0] sm:$0xff]
    %v77 = vld [vmem:[#allocation7 + $0xd8] sm:$0xff]
    %v78 = vld [vmem:[#allocation7 + $0xe0] sm:$0xff]
    %v79 = vld [vmem:[#allocation7 + $0xe8] sm:$0xff]
    %v80 = vld [vmem:[#allocation7 + $0xf0] sm:$0xff]
    %v81 = vld [vmem:[#allocation7 + $0xf8] sm:$0xff]
    %s82 = scalar_lea.vmem [#allocation7], 256
    %v83 = vld [vmem:[%s82] sm:$0xff]
    %v84 = vld [vmem:[%s82 + $0x8] sm:$0xff]
    %v85 = vld [vmem:[%s82 + $0x10] sm:$0xff]
    %v86 = vld [vmem:[%s82 + $0x18] sm:$0xff]
    %v87 = vld [vmem:[%s82 + $0x20] sm:$0xff]
    %v88 = vld [vmem:[%s82 + $0x28] sm:$0xff]
    %v89 = vld [vmem:[%s82 + $0x30] sm:$0xff]
    %v90 = vld [vmem:[%s82 + $0x38] sm:$0xff]
    %v91 = vld [vmem:[%s82 + $0x40] sm:$0xff]
    %v92 = vld [vmem:[%s82 + $0x48] sm:$0xff]
    %v93 = vld [vmem:[%s82 + $0x50] sm:$0xff]
    %v94 = vld [vmem:[%s82 + $0x58] sm:$0xff]
    %v95 = vld [vmem:[%s82 + $0x60] sm:$0xff]
    %v96 = vld [vmem:[%s82 + $0x68] sm:$0xff]
    %v97 = vld [vmem:[%s82 + $0x70] sm:$0xff]
    %v98 = vld [vmem:[%s82 + $0x78] sm:$0xff]
    %v99 = vld [vmem:[%s82 + $0x80] sm:$0xff]
    %v100 = vld [vmem:[%s82 + $0x88] sm:$0xff]
    %v101 = vld [vmem:[%s82 + $0x90] sm:$0xff]
    %v102 = vld [vmem:[%s82 + $0x98] sm:$0xff]
    %v103 = vld [vmem:[%s82 + $0xa0] sm:$0xff]
    %v104 = vld [vmem:[%s82 + $0xa8] sm:$0xff]
    %v105 = vld [vmem:[%s82 + $0xb0] sm:$0xff]
    %v106 = vld [vmem:[%s82 + $0xb8] sm:$0xff]
    %v107 = vld [vmem:[%s82 + $0xc0] sm:$0xff]
    %v108 = vld [vmem:[%s82 + $0xc8] sm:$0xff]
    %v109 = vld [vmem:[%s82 + $0xd0] sm:$0xff]
    %v110 = vld [vmem:[%s82 + $0xd8] sm:$0xff]
    %v111 = vld [vmem:[%s82 + $0xe0] sm:$0xff]
    %v112 = vld [vmem:[%s82 + $0xe8] sm:$0xff]
    %v113 = vld [vmem:[%s82 + $0xf0] sm:$0xff]
    %v114 = vld [vmem:[%s82 + $0xf8] sm:$0xff]
    %v115 = vlaneseq
    %v116 = vshrl.u32 %v115, 7
    %vm117 = vcmp.lt.s32.totalorder %v116, 4
    %v118 = vld [vmem:[#allocation2] sm:$0xff]
    %v119 = vld [vmem:[#allocation3] sm:$0xff]
    %v120 = vpack.c.bf16 %v118, %v118
    %v153 = vunpack.c.l.b16 %v50
    %v154 = vunpack.c.h.b16 %v50
    %v155 = vunpack.c.l.b16 %v51
    %v156 = vunpack.c.h.b16 %v51
    %v157 = vunpack.c.l.b16 %v52
    %v158 = vunpack.c.h.b16 %v52
    %v159 = vunpack.c.l.b16 %v53
    %v160 = vunpack.c.h.b16 %v53
    %v161 = vunpack.c.l.b16 %v54
    %v162 = vunpack.c.h.b16 %v54
    %v163 = vunpack.c.l.b16 %v55
    %v164 = vunpack.c.h.b16 %v55
    %v165 = vunpack.c.l.b16 %v56
    %v166 = vunpack.c.h.b16 %v56
    %v167 = vunpack.c.l.b16 %v57
    %v168 = vunpack.c.h.b16 %v57
    %v169 = vunpack.c.l.b16 %v58
    %v170 = vunpack.c.h.b16 %v58
    %v171 = vunpack.c.l.b16 %v59
    %v172 = vunpack.c.h.b16 %v59
    %v173 = vunpack.c.l.b16 %v60
    %v174 = vunpack.c.h.b16 %v60
    %v175 = vunpack.c.l.b16 %v61
    %v176 = vunpack.c.h.b16 %v61
    %v177 = vunpack.c.l.b16 %v62
    %v178 = vunpack.c.h.b16 %v62
    %v179 = vunpack.c.l.b16 %v63
    %v180 = vunpack.c.h.b16 %v63
    %v181 = vunpack.c.l.b16 %v64
    %v182 = vunpack.c.h.b16 %v64
    %v183 = vunpack.c.l.b16 %v65
    %v184 = vunpack.c.h.b16 %v65
    %v185 = vunpack.c.l.b16 %v66
    %v186 = vunpack.c.h.b16 %v66
    %v187 = vunpack.c.l.b16 %v67
    %v188 = vunpack.c.h.b16 %v67
    %v189 = vunpack.c.l.b16 %v68
    %v190 = vunpack.c.h.b16 %v68
    %v191 = vunpack.c.l.b16 %v69
    %v192 = vunpack.c.h.b16 %v69
    %v193 = vunpack.c.l.b16 %v70
    %v194 = vunpack.c.h.b16 %v70
    %v195 = vunpack.c.l.b16 %v71
    %v196 = vunpack.c.h.b16 %v71
    %v197 = vunpack.c.l.b16 %v72
    %v198 = vunpack.c.h.b16 %v72
    %v199 = vunpack.c.l.b16 %v73
    %v200 = vunpack.c.h.b16 %v73
    %v201 = vunpack.c.l.b16 %v74
    %v202 = vunpack.c.h.b16 %v74
    %v203 = vunpack.c.l.b16 %v75
    %v204 = vunpack.c.h.b16 %v75
    %v205 = vunpack.c.l.b16 %v76
    %v206 = vunpack.c.h.b16 %v76
    %v207 = vunpack.c.l.b16 %v77
    %v208 = vunpack.c.h.b16 %v77
    %v209 = vunpack.c.l.b16 %v78
    %v210 = vunpack.c.h.b16 %v78
    %v211 = vunpack.c.l.b16 %v79
    %v212 = vunpack.c.h.b16 %v79
    %v213 = vunpack.c.l.b16 %v80
    %v214 = vunpack.c.h.b16 %v80
    %v215 = vunpack.c.l.b16 %v81
    %v216 = vunpack.c.h.b16 %v81
    %v217 = vpack.c.b16 %v157, %v153
    %v218 = vpack.c.b16 %v158, %v154
    %v219 = vpack.c.b16 %v159, %v155
    %v220 = vpack.c.b16 %v160, %v156
    %v221 = vpack.c.b16 %v165, %v161
    %v222 = vpack.c.b16 %v166, %v162
    %v223 = vpack.c.b16 %v167, %v163
    %v224 = vpack.c.b16 %v168, %v164
    %v225 = vpack.c.b16 %v173, %v169
    %v226 = vpack.c.b16 %v174, %v170
    %v227 = vpack.c.b16 %v175, %v171
    %v228 = vpack.c.b16 %v176, %v172
    %v229 = vpack.c.b16 %v181, %v177
    %v230 = vpack.c.b16 %v182, %v178
    %v231 = vpack.c.b16 %v183, %v179
    %v232 = vpack.c.b16 %v184, %v180
    %v233 = vpack.c.b16 %v189, %v185
    %v234 = vpack.c.b16 %v190, %v186
    %v235 = vpack.c.b16 %v191, %v187
    %v236 = vpack.c.b16 %v192, %v188
    %v237 = vpack.c.b16 %v197, %v193
    %v238 = vpack.c.b16 %v198, %v194
    %v239 = vpack.c.b16 %v199, %v195
    %v240 = vpack.c.b16 %v200, %v196
    %v241 = vpack.c.b16 %v205, %v201
    %v242 = vpack.c.b16 %v206, %v202
    %v243 = vpack.c.b16 %v207, %v203
    %v244 = vpack.c.b16 %v208, %v204
    %v245 = vpack.c.b16 %v213, %v209
    %v246 = vpack.c.b16 %v214, %v210
    %v247 = vpack.c.b16 %v215, %v211
    %v248 = vpack.c.b16 %v216, %v212
    %281 = vmatpush.bf16.msra.mxu0 %v245
    %282 = vmatpush.bf16.msra.mxu0 %v241
    %283 = vmatpush.bf16.msra.mxu0 %v237
    %284 = vmatpush.bf16.msra.mxu0 %v233
    %285 = vmatpush.bf16.msra.mxu0 %v229
    %286 = vmatpush.bf16.msra.mxu0 %v225
    %287 = vmatpush.bf16.msra.mxu0 %v221
    %288 = vmatpush.bf16.msra.mxu0 %v217
    %289 = vmatmul.bf16.gmra.mxu0 %v120
    %v290 = vpop.f32.mrf.mxu0
    %v291 = vadd.f32 0.0, %v290
    %v292 = vpop.f32.mrf.mxu0
    %293 = vdwg.mxu0
    %294 = vmatpush.bf16.msra.mxu0 %v246
    %295 = vmatpush.bf16.msra.mxu0 %v242
    %296 = vmatpush.bf16.msra.mxu0 %v238
    %297 = vmatpush.bf16.msra.mxu0 %v234
    %298 = vmatpush.bf16.msra.mxu0 %v230
    %299 = vmatpush.bf16.msra.mxu0 %v226
    %300 = vmatpush.bf16.msra.mxu0 %v222
    %301 = vmatpush.bf16.msra.mxu0 %v218
    %302 = vmatmul.bf16.gmra.mxu0 %v120
    %v303 = vpop.f32.mrf.mxu0
    %v304 = vadd.f32 0.0, %v303
    %v305 = vpop.f32.mrf.mxu0
    %306 = vdwg.mxu0
    %307 = vmatpush.bf16.msra.mxu0 %v247
    %308 = vmatpush.bf16.msra.mxu0 %v243
    %309 = vmatpush.bf16.msra.mxu0 %v239
    %310 = vmatpush.bf16.msra.mxu0 %v235
    %311 = vmatpush.bf16.msra.mxu0 %v231
    %312 = vmatpush.bf16.msra.mxu0 %v227
    %313 = vmatpush.bf16.msra.mxu0 %v223
    %314 = vmatpush.bf16.msra.mxu0 %v219
    %315 = vmatmul.bf16.gmra.mxu0 %v120
    %v316 = vpop.f32.mrf.mxu0
    %v317 = vadd.f32 0.0, %v316
    %v318 = vpop.f32.mrf.mxu0
    %319 = vdwg.mxu0
    %320 = vmatpush.bf16.msra.mxu0 %v248
    %321 = vmatpush.bf16.msra.mxu0 %v244
    %322 = vmatpush.bf16.msra.mxu0 %v240
    %323 = vmatpush.bf16.msra.mxu0 %v236
    %324 = vmatpush.bf16.msra.mxu0 %v232
    %325 = vmatpush.bf16.msra.mxu0 %v228
    %326 = vmatpush.bf16.msra.mxu0 %v224
    %327 = vmatpush.bf16.msra.mxu0 %v220
    %328 = vmatmul.bf16.gmra.mxu0 %v120
    %v329 = vpop.f32.mrf.mxu0
    %v330 = vadd.f32 0.0, %v329
    %v331 = vpop.f32.mrf.mxu0
    %332 = vdwg.mxu0
    %v365 = vunpack.c.l.b16 %v83
    %v366 = vunpack.c.h.b16 %v83
    %v367 = vunpack.c.l.b16 %v84
    %v368 = vunpack.c.h.b16 %v84
    %v369 = vunpack.c.l.b16 %v85
    %v370 = vunpack.c.h.b16 %v85
    %v371 = vunpack.c.l.b16 %v86
    %v372 = vunpack.c.h.b16 %v86
    %v373 = vunpack.c.l.b16 %v87
    %v374 = vunpack.c.h.b16 %v87
    %v375 = vunpack.c.l.b16 %v88
    %v376 = vunpack.c.h.b16 %v88
    %v377 = vunpack.c.l.b16 %v89
    %v378 = vunpack.c.h.b16 %v89
    %v379 = vunpack.c.l.b16 %v90
    %v380 = vunpack.c.h.b16 %v90
    %v381 = vunpack.c.l.b16 %v91
    %v382 = vunpack.c.h.b16 %v91
    %v383 = vunpack.c.l.b16 %v92
    %v384 = vunpack.c.h.b16 %v92
    %v385 = vunpack.c.l.b16 %v93
    %v386 = vunpack.c.h.b16 %v93
    %v387 = vunpack.c.l.b16 %v94
    %v388 = vunpack.c.h.b16 %v94
    %v389 = vunpack.c.l.b16 %v95
    %v390 = vunpack.c.h.b16 %v95
    %v391 = vunpack.c.l.b16 %v96
    %v392 = vunpack.c.h.b16 %v96
    %v393 = vunpack.c.l.b16 %v97
    %v394 = vunpack.c.h.b16 %v97
    %v395 = vunpack.c.l.b16 %v98
    %v396 = vunpack.c.h.b16 %v98
    %v397 = vunpack.c.l.b16 %v99
    %v398 = vunpack.c.h.b16 %v99
    %v399 = vunpack.c.l.b16 %v100
    %v400 = vunpack.c.h.b16 %v100
    %v401 = vunpack.c.l.b16 %v101
    %v402 = vunpack.c.h.b16 %v101
    %v403 = vunpack.c.l.b16 %v102
    %v404 = vunpack.c.h.b16 %v102
    %v405 = vunpack.c.l.b16 %v103
    %v406 = vunpack.c.h.b16 %v103
    %v407 = vunpack.c.l.b16 %v104
    %v408 = vunpack.c.h.b16 %v104
    %v409 = vunpack.c.l.b16 %v105
    %v410 = vunpack.c.h.b16 %v105
    %v411 = vunpack.c.l.b16 %v106
    %v412 = vunpack.c.h.b16 %v106
    %v413 = vunpack.c.l.b16 %v107
    %v414 = vunpack.c.h.b16 %v107
    %v415 = vunpack.c.l.b16 %v108
    %v416 = vunpack.c.h.b16 %v108
    %v417 = vunpack.c.l.b16 %v109
    %v418 = vunpack.c.h.b16 %v109
    %v419 = vunpack.c.l.b16 %v110
    %v420 = vunpack.c.h.b16 %v110
    %v421 = vunpack.c.l.b16 %v111
    %v422 = vunpack.c.h.b16 %v111
    %v423 = vunpack.c.l.b16 %v112
    %v424 = vunpack.c.h.b16 %v112
    %v425 = vunpack.c.l.b16 %v113
    %v426 = vunpack.c.h.b16 %v113
    %v427 = vunpack.c.l.b16 %v114
    %v428 = vunpack.c.h.b16 %v114
    %v429 = vpack.c.b16 %v369, %v365
    %v430 = vpack.c.b16 %v370, %v366
    %v431 = vpack.c.b16 %v371, %v367
    %v432 = vpack.c.b16 %v372, %v368
    %v433 = vpack.c.b16 %v377, %v373
    %v434 = vpack.c.b16 %v378, %v374
    %v435 = vpack.c.b16 %v379, %v375
    %v436 = vpack.c.b16 %v380, %v376
    %v437 = vpack.c.b16 %v385, %v381
    %v438 = vpack.c.b16 %v386, %v382
    %v439 = vpack.c.b16 %v387, %v383
    %v440 = vpack.c.b16 %v388, %v384
    %v441 = vpack.c.b16 %v393, %v389
    %v442 = vpack.c.b16 %v394, %v390
    %v443 = vpack.c.b16 %v395, %v391
    %v444 = vpack.c.b16 %v396, %v392
    %v445 = vpack.c.b16 %v401, %v397
    %v446 = vpack.c.b16 %v402, %v398
    %v447 = vpack.c.b16 %v403, %v399
    %v448 = vpack.c.b16 %v404, %v400
    %v449 = vpack.c.b16 %v409, %v405
    %v450 = vpack.c.b16 %v410, %v406
    %v451 = vpack.c.b16 %v411, %v407
    %v452 = vpack.c.b16 %v412, %v408
    %v453 = vpack.c.b16 %v417, %v413
    %v454 = vpack.c.b16 %v418, %v414
    %v455 = vpack.c.b16 %v419, %v415
    %v456 = vpack.c.b16 %v420, %v416
    %v457 = vpack.c.b16 %v425, %v421
    %v458 = vpack.c.b16 %v426, %v422
    %v459 = vpack.c.b16 %v427, %v423
    %v460 = vpack.c.b16 %v428, %v424
    %493 = vmatpush.bf16.msra.mxu0 %v457
    %494 = vmatpush.bf16.msra.mxu0 %v453
    %495 = vmatpush.bf16.msra.mxu0 %v449
    %496 = vmatpush.bf16.msra.mxu0 %v445
    %497 = vmatpush.bf16.msra.mxu0 %v441
    %498 = vmatpush.bf16.msra.mxu0 %v437
    %499 = vmatpush.bf16.msra.mxu0 %v433
    %500 = vmatpush.bf16.msra.mxu0 %v429
    %501 = vmatmul.bf16.gmra.mxu0 %v120
    %v502 = vpop.f32.mrf.mxu0
    %v503 = vadd.f32 0.0, %v502
    %v504 = vpop.f32.mrf.mxu0
    %505 = vdwg.mxu0
    %506 = vmatpush.bf16.msra.mxu0 %v458
    %507 = vmatpush.bf16.msra.mxu0 %v454
    %508 = vmatpush.bf16.msra.mxu0 %v450
    %509 = vmatpush.bf16.msra.mxu0 %v446
    %510 = vmatpush.bf16.msra.mxu0 %v442
    %511 = vmatpush.bf16.msra.mxu0 %v438
    %512 = vmatpush.bf16.msra.mxu0 %v434
    %513 = vmatpush.bf16.msra.mxu0 %v430
    %514 = vmatmul.bf16.gmra.mxu0 %v120
    %v515 = vpop.f32.mrf.mxu0
    %v516 = vadd.f32 0.0, %v515
    %v517 = vpop.f32.mrf.mxu0
    %518 = vdwg.mxu0
    %519 = vmatpush.bf16.msra.mxu0 %v459
    %520 = vmatpush.bf16.msra.mxu0 %v455
    %521 = vmatpush.bf16.msra.mxu0 %v451
    %522 = vmatpush.bf16.msra.mxu0 %v447
    %523 = vmatpush.bf16.msra.mxu0 %v443
    %524 = vmatpush.bf16.msra.mxu0 %v439
    %525 = vmatpush.bf16.msra.mxu0 %v435
    %526 = vmatpush.bf16.msra.mxu0 %v431
    %527 = vmatmul.bf16.gmra.mxu0 %v120
    %v528 = vpop.f32.mrf.mxu0
    %v529 = vadd.f32 0.0, %v528
    %v530 = vpop.f32.mrf.mxu0
    %531 = vdwg.mxu0
    %532 = vmatpush.bf16.msra.mxu0 %v460
    %533 = vmatpush.bf16.msra.mxu0 %v456
    %534 = vmatpush.bf16.msra.mxu0 %v452
    %535 = vmatpush.bf16.msra.mxu0 %v448
    %536 = vmatpush.bf16.msra.mxu0 %v444
    %537 = vmatpush.bf16.msra.mxu0 %v440
    %538 = vmatpush.bf16.msra.mxu0 %v436
    %539 = vmatpush.bf16.msra.mxu0 %v432
    %540 = vmatmul.bf16.gmra.mxu0 %v120
    %v541 = vpop.f32.mrf.mxu0
    %v542 = vadd.f32 0.0, %v541
    %v543 = vpop.f32.mrf.mxu0
    %544 = vdwg.mxu0
    %v545 = vld [vmem:[#allocation4] sm:$0xff]
    %v546 = vld [vmem:[#allocation4 + $0x8] sm:$0xff]
    %v547 = vunpack.c.l.bf16 %v545
    %v548 = vunpack.c.h.bf16 %v545
    %v549 = vunpack.c.l.bf16 %v546
    %v550 = vunpack.c.h.bf16 %v546
    %v551 = vsel %vm117, %v291, %v503
    %v552 = vsel %vm117, %v304, %v516
    %v553 = vsel %vm117, %v317, %v529
    %v554 = vsel %vm117, %v330, %v542
    %v555 = vadd.f32 %v547, %v551
    %v556 = vadd.f32 %v548, %v552
    %v557 = vadd.f32 %v549, %v553
    %v558 = vadd.f32 %v550, %v554
    %v559 = vmul.f32 %v555, 0.5
    %v560 = vtanh.pop %v559
    %v561 = vmul.f32 %v560, 0.5
    %v562 = vadd.f32 %v561, 0.5
    %v563 = vmul.f32 %v556, 0.5
    %v564 = vtanh.pop %v563
    %v565 = vmul.f32 %v564, 0.5
    %v566 = vadd.f32 %v565, 0.5
    %v567 = vtanh.pop %v557
    %v568 = vmul.f32 %v558, 0.5
    %v569 = vtanh.pop %v568
    %v570 = vmul.f32 %v569, 0.5
    %v571 = vadd.f32 %v570, 0.5
    %v572 = vmul.f32 %v566, %v119
    %v573 = vmul.f32 %v562, %v567
    %v574 = vadd.f32 %v572, %v573
    %v575 = vtanh.pop %v574
    %v576 = vmul.f32 %v571, %v575
    %v577 = vpack.c.bf16 %v576, %v576
    %578 = vst [vmem:[#allocation9] sm:$0xf] %v577
    %579 = vmatpush.bf16.msra.mxu0 %v245
    %580 = vmatpush.bf16.msra.mxu0 %v241
    %581 = vmatpush.bf16.msra.mxu0 %v237
    %582 = vmatpush.bf16.msra.mxu0 %v233
    %583 = vmatpush.bf16.msra.mxu0 %v229
    %584 = vmatpush.bf16.msra.mxu0 %v225
    %585 = vmatpush.bf16.msra.mxu0 %v221
    %586 = vmatpush.bf16.msra.mxu0 %v217
    %587 = vmatmul.bf16.gmra.mxu0 %v577
    %v588 = vpop.f32.mrf.mxu0
    %v589 = vadd.f32 0.0, %v588
    %v590 = vpop.f32.mrf.mxu0
    %591 = vdwg.mxu0
    %592 = vmatpush.bf16.msra.mxu0 %v246
    %593 = vmatpush.bf16.msra.mxu0 %v242
    %594 = vmatpush.bf16.msra.mxu0 %v238
    %595 = vmatpush.bf16.msra.mxu0 %v234
    %596 = vmatpush.bf16.msra.mxu0 %v230
    %597 = vmatpush.bf16.msra.mxu0 %v226
    %598 = vmatpush.bf16.msra.mxu0 %v222
    %599 = vmatpush.bf16.msra.mxu0 %v218
    %600 = vmatmul.bf16.gmra.mxu0 %v577
    %v601 = vpop.f32.mrf.mxu0
    %v602 = vadd.f32 0.0, %v601
    %v603 = vpop.f32.mrf.mxu0
    %604 = vdwg.mxu0
    %605 = vmatpush.bf16.msra.mxu0 %v247
    %606 = vmatpush.bf16.msra.mxu0 %v243
    %607 = vmatpush.bf16.msra.mxu0 %v239
    %608 = vmatpush.bf16.msra.mxu0 %v235
    %609 = vmatpush.bf16.msra.mxu0 %v231
    %610 = vmatpush.bf16.msra.mxu0 %v227
    %611 = vmatpush.bf16.msra.mxu0 %v223
    %612 = vmatpush.bf16.msra.mxu0 %v219
    %613 = vmatmul.bf16.gmra.mxu0 %v577
    %v614 = vpop.f32.mrf.mxu0
    %v615 = vadd.f32 0.0, %v614
    %v616 = vpop.f32.mrf.mxu0
    %617 = vdwg.mxu0
    %618 = vmatpush.bf16.msra.mxu0 %v248
    %619 = vmatpush.bf16.msra.mxu0 %v244
    %620 = vmatpush.bf16.msra.mxu0 %v240
    %621 = vmatpush.bf16.msra.mxu0 %v236
    %622 = vmatpush.bf16.msra.mxu0 %v232
    %623 = vmatpush.bf16.msra.mxu0 %v228
    %624 = vmatpush.bf16.msra.mxu0 %v224
    %625 = vmatpush.bf16.msra.mxu0 %v220
    %626 = vmatmul.bf16.gmra.mxu0 %v577
    %v627 = vpop.f32.mrf.mxu0
    %v628 = vadd.f32 0.0, %v627
    %v629 = vpop.f32.mrf.mxu0
    %630 = vdwg.mxu0
    %631 = vmatpush.bf16.msra.mxu0 %v457
    %632 = vmatpush.bf16.msra.mxu0 %v453
    %633 = vmatpush.bf16.msra.mxu0 %v449
    %634 = vmatpush.bf16.msra.mxu0 %v445
    %635 = vmatpush.bf16.msra.mxu0 %v441
    %636 = vmatpush.bf16.msra.mxu0 %v437
    %637 = vmatpush.bf16.msra.mxu0 %v433
    %638 = vmatpush.bf16.msra.mxu0 %v429
    %639 = vmatmul.bf16.gmra.mxu0 %v577
    %v640 = vpop.f32.mrf.mxu0
    %v641 = vadd.f32 0.0, %v640
    %v642 = vpop.f32.mrf.mxu0
    %643 = vdwg.mxu0
    %644 = vmatpush.bf16.msra.mxu0 %v458
    %645 = vmatpush.bf16.msra.mxu0 %v454
    %646 = vmatpush.bf16.msra.mxu0 %v450
    %647 = vmatpush.bf16.msra.mxu0 %v446
    %648 = vmatpush.bf16.msra.mxu0 %v442
    %649 = vmatpush.bf16.msra.mxu0 %v438
    %650 = vmatpush.bf16.msra.mxu0 %v434
    %651 = vmatpush.bf16.msra.mxu0 %v430
    %652 = vmatmul.bf16.gmra.mxu0 %v577
    %v653 = vpop.f32.mrf.mxu0
    %v654 = vadd.f32 0.0, %v653
    %v655 = vpop.f32.mrf.mxu0
    %656 = vdwg.mxu0
    %657 = vmatpush.bf16.msra.mxu0 %v459
    %658 = vmatpush.bf16.msra.mxu0 %v455
    %659 = vmatpush.bf16.msra.mxu0 %v451
    %660 = vmatpush.bf16.msra.mxu0 %v447
    %661 = vmatpush.bf16.msra.mxu0 %v443
    %662 = vmatpush.bf16.msra.mxu0 %v439
    %663 = vmatpush.bf16.msra.mxu0 %v435
    %664 = vmatpush.bf16.msra.mxu0 %v431
    %665 = vmatmul.bf16.gmra.mxu0 %v577
    %v666 = vpop.f32.mrf.mxu0
    %v667 = vadd.f32 0.0, %v666
    %v668 = vpop.f32.mrf.mxu0
    %669 = vdwg.mxu0
    %670 = vmatpush.bf16.msra.mxu0 %v460
    %671 = vmatpush.bf16.msra.mxu0 %v456
    %672 = vmatpush.bf16.msra.mxu0 %v452
    %673 = vmatpush.bf16.msra.mxu0 %v448
    %674 = vmatpush.bf16.msra.mxu0 %v444
    %675 = vmatpush.bf16.msra.mxu0 %v440
    %676 = vmatpush.bf16.msra.mxu0 %v436
    %677 = vmatpush.bf16.msra.mxu0 %v432
    %678 = vmatmul.bf16.gmra.mxu0 %v577
    %v679 = vpop.f32.mrf.mxu0
    %v680 = vadd.f32 0.0, %v679
    %v681 = vpop.f32.mrf.mxu0
    %682 = vdwg.mxu0
    %s683 = scalar_lea.vmem [#allocation4], 16
    %v684 = vld [vmem:[%s683] sm:$0xff]
    %v685 = vld [vmem:[%s683 + $0x8] sm:$0xff]
    %v686 = vunpack.c.l.bf16 %v684
    %v687 = vunpack.c.h.bf16 %v684
    %v688 = vunpack.c.l.bf16 %v685
    %v689 = vunpack.c.h.bf16 %v685
    %v690 = vsel %vm117, %v589, %v641
    %v691 = vsel %vm117, %v602, %v654
    %v692 = vsel %vm117, %v615, %v667
    %v693 = vsel %vm117, %v628, %v680
    %v694 = vadd.f32 %v686, %v690
    %v695 = vadd.f32 %v687, %v691
    %v696 = vadd.f32 %v688, %v692
    %v697 = vadd.f32 %v689, %v693
    %v698 = vmul.f32 %v694, 0.5
    %v699 = vtanh.pop %v698
    %v700 = vmul.f32 %v699, 0.5
    %v701 = vadd.f32 %v700, 0.5
    %v702 = vmul.f32 %v695, 0.5
    %v703 = vtanh.pop %v702
    %v704 = vmul.f32 %v703, 0.5
    %v705 = vadd.f32 %v704, 0.5
    %v706 = vtanh.pop %v696
    %v707 = vmul.f32 %v697, 0.5
    %v708 = vtanh.pop %v707
    %v709 = vmul.f32 %v708, 0.5
    %v710 = vadd.f32 %v709, 0.5
    %v711 = vmul.f32 %v705, %v574
    %v712 = vmul.f32 %v701, %v706
    %v713 = vadd.f32 %v711, %v712
    %v714 = vtanh.pop %v713
    %v715 = vmul.f32 %v710, %v714
    %v716 = vpack.c.bf16 %v715, %v715
    %s717 = scalar_lea.vmem [#allocation9], 4
    %718 = vst [vmem:[%s717] sm:$0xf] %v716
    %719 = vmatpush.bf16.msra.mxu0 %v245
    %720 = vmatpush.bf16.msra.mxu0 %v241
    %721 = vmatpush.bf16.msra.mxu0 %v237
    %722 = vmatpush.bf16.msra.mxu0 %v233
    %723 = vmatpush.bf16.msra.mxu0 %v229
    %724 = vmatpush.bf16.msra.mxu0 %v225
    %725 = vmatpush.bf16.msra.mxu0 %v221
    %726 = vmatpush.bf16.msra.mxu0 %v217
    %727 = vmatmul.bf16.gmra.mxu0 %v716
    %v728 = vpop.f32.mrf.mxu0
    %v729 = vadd.f32 0.0, %v728
    %v730 = vpop.f32.mrf.mxu0
    %731 = vdwg.mxu0
    %732 = vmatpush.bf16.msra.mxu0 %v246
    %733 = vmatpush.bf16.msra.mxu0 %v242
    %734 = vmatpush.bf16.msra.mxu0 %v238
    %735 = vmatpush.bf16.msra.mxu0 %v234
    %736 = vmatpush.bf16.msra.mxu0 %v230
    %737 = vmatpush.bf16.msra.mxu0 %v226
    %738 = vmatpush.bf16.msra.mxu0 %v222
    %739 = vmatpush.bf16.msra.mxu0 %v218
    %740 = vmatmul.bf16.gmra.mxu0 %v716
    %v741 = vpop.f32.mrf.mxu0
    %v742 = vadd.f32 0.0, %v741
    %v743 = vpop.f32.mrf.mxu0
    %744 = vdwg.mxu0
    %745 = vmatpush.bf16.msra.mxu0 %v247
    %746 = vmatpush.bf16.msra.mxu0 %v243
    %747 = vmatpush.bf16.msra.mxu0 %v239
    %748 = vmatpush.bf16.msra.mxu0 %v235
    %749 = vmatpush.bf16.msra.mxu0 %v231
    %750 = vmatpush.bf16.msra.mxu0 %v227
    %751 = vmatpush.bf16.msra.mxu0 %v223
    %752 = vmatpush.bf16.msra.mxu0 %v219
    %753 = vmatmul.bf16.gmra.mxu0 %v716
    %v754 = vpop.f32.mrf.mxu0
    %v755 = vadd.f32 0.0, %v754
    %v756 = vpop.f32.mrf.mxu0
    %757 = vdwg.mxu0
    %758 = vmatpush.bf16.msra.mxu0 %v248
    %759 = vmatpush.bf16.msra.mxu0 %v244
    %760 = vmatpush.bf16.msra.mxu0 %v240
    %761 = vmatpush.bf16.msra.mxu0 %v236
    %762 = vmatpush.bf16.msra.mxu0 %v232
    %763 = vmatpush.bf16.msra.mxu0 %v228
    %764 = vmatpush.bf16.msra.mxu0 %v224
    %765 = vmatpush.bf16.msra.mxu0 %v220
    %766 = vmatmul.bf16.gmra.mxu0 %v716
    %v767 = vpop.f32.mrf.mxu0
    %v768 = vadd.f32 0.0, %v767
    %v769 = vpop.f32.mrf.mxu0
    %770 = vdwg.mxu0
    %771 = vmatpush.bf16.msra.mxu0 %v457
    %772 = vmatpush.bf16.msra.mxu0 %v453
    %773 = vmatpush.bf16.msra.mxu0 %v449
    %774 = vmatpush.bf16.msra.mxu0 %v445
    %775 = vmatpush.bf16.msra.mxu0 %v441
    %776 = vmatpush.bf16.msra.mxu0 %v437
    %777 = vmatpush.bf16.msra.mxu0 %v433
    %778 = vmatpush.bf16.msra.mxu0 %v429
    %779 = vmatmul.bf16.gmra.mxu0 %v716
    %v780 = vpop.f32.mrf.mxu0
    %v781 = vadd.f32 0.0, %v780
    %v782 = vpop.f32.mrf.mxu0
    %783 = vdwg.mxu0
    %784 = vmatpush.bf16.msra.mxu0 %v458
    %785 = vmatpush.bf16.msra.mxu0 %v454
    %786 = vmatpush.bf16.msra.mxu0 %v450
    %787 = vmatpush.bf16.msra.mxu0 %v446
    %788 = vmatpush.bf16.msra.mxu0 %v442
    %789 = vmatpush.bf16.msra.mxu0 %v438
    %790 = vmatpush.bf16.msra.mxu0 %v434
    %791 = vmatpush.bf16.msra.mxu0 %v430
    %792 = vmatmul.bf16.gmra.mxu0 %v716
    %v793 = vpop.f32.mrf.mxu0
    %v794 = vadd.f32 0.0, %v793
    %v795 = vpop.f32.mrf.mxu0
    %796 = vdwg.mxu0
    %797 = vmatpush.bf16.msra.mxu0 %v459
    %798 = vmatpush.bf16.msra.mxu0 %v455
    %799 = vmatpush.bf16.msra.mxu0 %v451
    %800 = vmatpush.bf16.msra.mxu0 %v447
    %801 = vmatpush.bf16.msra.mxu0 %v443
    %802 = vmatpush.bf16.msra.mxu0 %v439
    %803 = vmatpush.bf16.msra.mxu0 %v435
    %804 = vmatpush.bf16.msra.mxu0 %v431
    %805 = vmatmul.bf16.gmra.mxu0 %v716
    %v806 = vpop.f32.mrf.mxu0
    %v807 = vadd.f32 0.0, %v806
    %v808 = vpop.f32.mrf.mxu0
    %809 = vdwg.mxu0
    %810 = vmatpush.bf16.msra.mxu0 %v460
    %811 = vmatpush.bf16.msra.mxu0 %v456
    %812 = vmatpush.bf16.msra.mxu0 %v452
    %813 = vmatpush.bf16.msra.mxu0 %v448
    %814 = vmatpush.bf16.msra.mxu0 %v444
    %815 = vmatpush.bf16.msra.mxu0 %v440
    %816 = vmatpush.bf16.msra.mxu0 %v436
    %817 = vmatpush.bf16.msra.mxu0 %v432
    %818 = vmatmul.bf16.gmra.mxu0 %v716
    %v819 = vpop.f32.mrf.mxu0
    %v820 = vadd.f32 0.0, %v819
    %v821 = vpop.f32.mrf.mxu0
    %822 = vdwg.mxu0
    %s823 = scalar_lea.vmem [#allocation4], 32
    %v824 = vld [vmem:[%s823] sm:$0xff]
    %v825 = vld [vmem:[%s823 + $0x8] sm:$0xff]
    %v826 = vunpack.c.l.bf16 %v824
    %v827 = vunpack.c.h.bf16 %v824
    %v828 = vunpack.c.l.bf16 %v825
    %v829 = vunpack.c.h.bf16 %v825
    %v830 = vsel %vm117, %v729, %v781
    %v831 = vsel %vm117, %v742, %v794
    %v832 = vsel %vm117, %v755, %v807
    %v833 = vsel %vm117, %v768, %v820
    %v834 = vadd.f32 %v826, %v830
    %v835 = vadd.f32 %v827, %v831
    %v836 = vadd.f32 %v828, %v832
    %v837 = vadd.f32 %v829, %v833
    %v838 = vmul.f32 %v834, 0.5
    %v839 = vtanh.pop %v838
    %v840 = vmul.f32 %v839, 0.5
    %v841 = vadd.f32 %v840, 0.5
    %v842 = vmul.f32 %v835, 0.5
    %v843 = vtanh.pop %v842
    %v844 = vmul.f32 %v843, 0.5
    %v845 = vadd.f32 %v844, 0.5
    %v846 = vtanh.pop %v836
    %v847 = vmul.f32 %v837, 0.5
    %v848 = vtanh.pop %v847
    %v849 = vmul.f32 %v848, 0.5
    %v850 = vadd.f32 %v849, 0.5
    %v851 = vmul.f32 %v845, %v713
    %v852 = vmul.f32 %v841, %v846
    %v853 = vadd.f32 %v851, %v852
    %v854 = vtanh.pop %v853
    %v855 = vmul.f32 %v850, %v854
    %v856 = vpack.c.bf16 %v855, %v855
    %s857 = scalar_lea.vmem [#allocation9], 8
    %858 = vst [vmem:[%s857] sm:$0xf] %v856
    %859 = vmatpush.bf16.msra.mxu0 %v245
    %860 = vmatpush.bf16.msra.mxu0 %v241
    %861 = vmatpush.bf16.msra.mxu0 %v237
    %862 = vmatpush.bf16.msra.mxu0 %v233
    %863 = vmatpush.bf16.msra.mxu0 %v229
    %864 = vmatpush.bf16.msra.mxu0 %v225
    %865 = vmatpush.bf16.msra.mxu0 %v221
    %866 = vmatpush.bf16.msra.mxu0 %v217
    %867 = vmatmul.bf16.gmra.mxu0 %v856
    %v868 = vpop.f32.mrf.mxu0
    %v869 = vadd.f32 0.0, %v868
    %v870 = vpop.f32.mrf.mxu0
    %871 = vdwg.mxu0
    %872 = vmatpush.bf16.msra.mxu0 %v246
    %873 = vmatpush.bf16.msra.mxu0 %v242
    %874 = vmatpush.bf16.msra.mxu0 %v238
    %875 = vmatpush.bf16.msra.mxu0 %v234
    %876 = vmatpush.bf16.msra.mxu0 %v230
    %877 = vmatpush.bf16.msra.mxu0 %v226
    %878 = vmatpush.bf16.msra.mxu0 %v222
    %879 = vmatpush.bf16.msra.mxu0 %v218
    %880 = vmatmul.bf16.gmra.mxu0 %v856
    %v881 = vpop.f32.mrf.mxu0
    %v882 = vadd.f32 0.0, %v881
    %v883 = vpop.f32.mrf.mxu0
    %884 = vdwg.mxu0
    %885 = vmatpush.bf16.msra.mxu0 %v247
    %886 = vmatpush.bf16.msra.mxu0 %v243
    %887 = vmatpush.bf16.msra.mxu0 %v239
    %888 = vmatpush.bf16.msra.mxu0 %v235
    %889 = vmatpush.bf16.msra.mxu0 %v231
    %890 = vmatpush.bf16.msra.mxu0 %v227
    %891 = vmatpush.bf16.msra.mxu0 %v223
    %892 = vmatpush.bf16.msra.mxu0 %v219
    %893 = vmatmul.bf16.gmra.mxu0 %v856
    %v894 = vpop.f32.mrf.mxu0
    %v895 = vadd.f32 0.0, %v894
    %v896 = vpop.f32.mrf.mxu0
    %897 = vdwg.mxu0
    %898 = vmatpush.bf16.msra.mxu0 %v248
    %899 = vmatpush.bf16.msra.mxu0 %v244
    %900 = vmatpush.bf16.msra.mxu0 %v240
    %901 = vmatpush.bf16.msra.mxu0 %v236
    %902 = vmatpush.bf16.msra.mxu0 %v232
    %903 = vmatpush.bf16.msra.mxu0 %v228
    %904 = vmatpush.bf16.msra.mxu0 %v224
    %905 = vmatpush.bf16.msra.mxu0 %v220
    %906 = vmatmul.bf16.gmra.mxu0 %v856
    %v907 = vpop.f32.mrf.mxu0
    %v908 = vadd.f32 0.0, %v907
    %v909 = vpop.f32.mrf.mxu0
    %910 = vdwg.mxu0
    %911 = vmatpush.bf16.msra.mxu0 %v457
    %912 = vmatpush.bf16.msra.mxu0 %v453
    %913 = vmatpush.bf16.msra.mxu0 %v449
    %914 = vmatpush.bf16.msra.mxu0 %v445
    %915 = vmatpush.bf16.msra.mxu0 %v441
    %916 = vmatpush.bf16.msra.mxu0 %v437
    %917 = vmatpush.bf16.msra.mxu0 %v433
    %918 = vmatpush.bf16.msra.mxu0 %v429
    %919 = vmatmul.bf16.gmra.mxu0 %v856
    %v920 = vpop.f32.mrf.mxu0
    %v921 = vadd.f32 0.0, %v920
    %v922 = vpop.f32.mrf.mxu0
    %923 = vdwg.mxu0
    %924 = vmatpush.bf16.msra.mxu0 %v458
    %925 = vmatpush.bf16.msra.mxu0 %v454
    %926 = vmatpush.bf16.msra.mxu0 %v450
    %927 = vmatpush.bf16.msra.mxu0 %v446
    %928 = vmatpush.bf16.msra.mxu0 %v442
    %929 = vmatpush.bf16.msra.mxu0 %v438
    %930 = vmatpush.bf16.msra.mxu0 %v434
    %931 = vmatpush.bf16.msra.mxu0 %v430
    %932 = vmatmul.bf16.gmra.mxu0 %v856
    %v933 = vpop.f32.mrf.mxu0
    %v934 = vadd.f32 0.0, %v933
    %v935 = vpop.f32.mrf.mxu0
    %936 = vdwg.mxu0
    %937 = vmatpush.bf16.msra.mxu0 %v459
    %938 = vmatpush.bf16.msra.mxu0 %v455
    %939 = vmatpush.bf16.msra.mxu0 %v451
    %940 = vmatpush.bf16.msra.mxu0 %v447
    %941 = vmatpush.bf16.msra.mxu0 %v443
    %942 = vmatpush.bf16.msra.mxu0 %v439
    %943 = vmatpush.bf16.msra.mxu0 %v435
    %944 = vmatpush.bf16.msra.mxu0 %v431
    %945 = vmatmul.bf16.gmra.mxu0 %v856
    %v946 = vpop.f32.mrf.mxu0
    %v947 = vadd.f32 0.0, %v946
    %v948 = vpop.f32.mrf.mxu0
    %949 = vdwg.mxu0
    %950 = vmatpush.bf16.msra.mxu0 %v460
    %951 = vmatpush.bf16.msra.mxu0 %v456
    %952 = vmatpush.bf16.msra.mxu0 %v452
    %953 = vmatpush.bf16.msra.mxu0 %v448
    %954 = vmatpush.bf16.msra.mxu0 %v444
    %955 = vmatpush.bf16.msra.mxu0 %v440
    %956 = vmatpush.bf16.msra.mxu0 %v436
    %957 = vmatpush.bf16.msra.mxu0 %v432
    %958 = vmatmul.bf16.gmra.mxu0 %v856
    %v959 = vpop.f32.mrf.mxu0
    %v960 = vadd.f32 0.0, %v959
    %v961 = vpop.f32.mrf.mxu0
    %962 = vdwg.mxu0
    %s963 = scalar_lea.vmem [#allocation4], 48
    %v964 = vld [vmem:[%s963] sm:$0xff]
    %v965 = vld [vmem:[%s963 + $0x8] sm:$0xff]
    %v966 = vunpack.c.l.bf16 %v964
    %v967 = vunpack.c.h.bf16 %v964
    %v968 = vunpack.c.l.bf16 %v965
    %v969 = vunpack.c.h.bf16 %v965
    %v970 = vsel %vm117, %v869, %v921
    %v971 = vsel %vm117, %v882, %v934
    %v972 = vsel %vm117, %v895, %v947
    %v973 = vsel %vm117, %v908, %v960
    %v974 = vadd.f32 %v966, %v970
    %v975 = vadd.f32 %v967, %v971
    %v976 = vadd.f32 %v968, %v972
    %v977 = vadd.f32 %v969, %v973
    %v978 = vmul.f32 %v974, 0.5
    %v979 = vtanh.pop %v978
    %v980 = vmul.f32 %v979, 0.5
    %v981 = vadd.f32 %v980, 0.5
    %v982 = vmul.f32 %v975, 0.5
    %v983 = vtanh.pop %v982
    %v984 = vmul.f32 %v983, 0.5
    %v985 = vadd.f32 %v984, 0.5
    %v986 = vtanh.pop %v976
    %v987 = vmul.f32 %v977, 0.5
    %v988 = vtanh.pop %v987
    %v989 = vmul.f32 %v988, 0.5
    %v990 = vadd.f32 %v989, 0.5
    %v991 = vmul.f32 %v985, %v853
    %v992 = vmul.f32 %v981, %v986
    %v993 = vadd.f32 %v991, %v992
    %v994 = vtanh.pop %v993
    %v995 = vmul.f32 %v990, %v994
    %v996 = vpack.c.bf16 %v995, %v995
    %s997 = scalar_lea.vmem [#allocation9], 12
    %998 = vst [vmem:[%s997] sm:$0xf] %v996
    %999 = vmatpush.bf16.msra.mxu0 %v245
    %1000 = vmatpush.bf16.msra.mxu0 %v241
    %1001 = vmatpush.bf16.msra.mxu0 %v237
    %1002 = vmatpush.bf16.msra.mxu0 %v233
    %1003 = vmatpush.bf16.msra.mxu0 %v229
    %1004 = vmatpush.bf16.msra.mxu0 %v225
    %1005 = vmatpush.bf16.msra.mxu0 %v221
    %1006 = vmatpush.bf16.msra.mxu0 %v217
    %1007 = vmatmul.bf16.gmra.mxu0 %v996
    %v1008 = vpop.f32.mrf.mxu0
    %v1009 = vadd.f32 0.0, %v1008
    %v1010 = vpop.f32.mrf.mxu0
    %1011 = vdwg.mxu0
    %1012 = vmatpush.bf16.msra.mxu0 %v246
    %1013 = vmatpush.bf16.msra.mxu0 %v242
    %1014 = vmatpush.bf16.msra.mxu0 %v238
    %1015 = vmatpush.bf16.msra.mxu0 %v234
    %1016 = vmatpush.bf16.msra.mxu0 %v230
    %1017 = vmatpush.bf16.msra.mxu0 %v226
    %1018 = vmatpush.bf16.msra.mxu0 %v222
    %1019 = vmatpush.bf16.msra.mxu0 %v218
    %1020 = vmatmul.bf16.gmra.mxu0 %v996
    %v1021 = vpop.f32.mrf.mxu0
    %v1022 = vadd.f32 0.0, %v1021
    %v1023 = vpop.f32.mrf.mxu0
    %1024 = vdwg.mxu0
    %1025 = vmatpush.bf16.msra.mxu0 %v247
    %1026 = vmatpush.bf16.msra.mxu0 %v243
    %1027 = vmatpush.bf16.msra.mxu0 %v239
    %1028 = vmatpush.bf16.msra.mxu0 %v235
    %1029 = vmatpush.bf16.msra.mxu0 %v231
    %1030 = vmatpush.bf16.msra.mxu0 %v227
    %1031 = vmatpush.bf16.msra.mxu0 %v223
    %1032 = vmatpush.bf16.msra.mxu0 %v219
    %1033 = vmatmul.bf16.gmra.mxu0 %v996
    %v1034 = vpop.f32.mrf.mxu0
    %v1035 = vadd.f32 0.0, %v1034
    %v1036 = vpop.f32.mrf.mxu0
    %1037 = vdwg.mxu0
    %1038 = vmatpush.bf16.msra.mxu0 %v248
    %1039 = vmatpush.bf16.msra.mxu0 %v244
    %1040 = vmatpush.bf16.msra.mxu0 %v240
    %1041 = vmatpush.bf16.msra.mxu0 %v236
    %1042 = vmatpush.bf16.msra.mxu0 %v232
    %1043 = vmatpush.bf16.msra.mxu0 %v228
    %1044 = vmatpush.bf16.msra.mxu0 %v224
    %1045 = vmatpush.bf16.msra.mxu0 %v220
    %1046 = vmatmul.bf16.gmra.mxu0 %v996
    %v1047 = vpop.f32.mrf.mxu0
    %v1048 = vadd.f32 0.0, %v1047
    %v1049 = vpop.f32.mrf.mxu0
    %1050 = vdwg.mxu0
    %1051 = vmatpush.bf16.msra.mxu0 %v457
    %1052 = vmatpush.bf16.msra.mxu0 %v453
    %1053 = vmatpush.bf16.msra.mxu0 %v449
    %1054 = vmatpush.bf16.msra.mxu0 %v445
    %1055 = vmatpush.bf16.msra.mxu0 %v441
    %1056 = vmatpush.bf16.msra.mxu0 %v437
    %1057 = vmatpush.bf16.msra.mxu0 %v433
    %1058 = vmatpush.bf16.msra.mxu0 %v429
    %1059 = vmatmul.bf16.gmra.mxu0 %v996
    %v1060 = vpop.f32.mrf.mxu0
    %v1061 = vadd.f32 0.0, %v1060
    %v1062 = vpop.f32.mrf.mxu0
    %1063 = vdwg.mxu0
    %1064 = vmatpush.bf16.msra.mxu0 %v458
    %1065 = vmatpush.bf16.msra.mxu0 %v454
    %1066 = vmatpush.bf16.msra.mxu0 %v450
    %1067 = vmatpush.bf16.msra.mxu0 %v446
    %1068 = vmatpush.bf16.msra.mxu0 %v442
    %1069 = vmatpush.bf16.msra.mxu0 %v438
    %1070 = vmatpush.bf16.msra.mxu0 %v434
    %1071 = vmatpush.bf16.msra.mxu0 %v430
    %1072 = vmatmul.bf16.gmra.mxu0 %v996
    %v1073 = vpop.f32.mrf.mxu0
    %v1074 = vadd.f32 0.0, %v1073
    %v1075 = vpop.f32.mrf.mxu0
    %1076 = vdwg.mxu0
    %1077 = vmatpush.bf16.msra.mxu0 %v459
    %1078 = vmatpush.bf16.msra.mxu0 %v455
    %1079 = vmatpush.bf16.msra.mxu0 %v451
    %1080 = vmatpush.bf16.msra.mxu0 %v447
    %1081 = vmatpush.bf16.msra.mxu0 %v443
    %1082 = vmatpush.bf16.msra.mxu0 %v439
    %1083 = vmatpush.bf16.msra.mxu0 %v435
    %1084 = vmatpush.bf16.msra.mxu0 %v431
    %1085 = vmatmul.bf16.gmra.mxu0 %v996
    %v1086 = vpop.f32.mrf.mxu0
    %v1087 = vadd.f32 0.0, %v1086
    %v1088 = vpop.f32.mrf.mxu0
    %1089 = vdwg.mxu0
    %1090 = vmatpush.bf16.msra.mxu0 %v460
    %1091 = vmatpush.bf16.msra.mxu0 %v456
    %1092 = vmatpush.bf16.msra.mxu0 %v452
    %1093 = vmatpush.bf16.msra.mxu0 %v448
    %1094 = vmatpush.bf16.msra.mxu0 %v444
    %1095 = vmatpush.bf16.msra.mxu0 %v440
    %1096 = vmatpush.bf16.msra.mxu0 %v436
    %1097 = vmatpush.bf16.msra.mxu0 %v432
    %1098 = vmatmul.bf16.gmra.mxu0 %v996
    %v1099 = vpop.f32.mrf.mxu0
    %v1100 = vadd.f32 0.0, %v1099
    %v1101 = vpop.f32.mrf.mxu0
    %1102 = vdwg.mxu0
    %s1103 = scalar_lea.vmem [#allocation4], 64
    %v1104 = vld [vmem:[%s1103] sm:$0xff]
    %v1105 = vld [vmem:[%s1103 + $0x8] sm:$0xff]
    %v1106 = vunpack.c.l.bf16 %v1104
    %v1107 = vunpack.c.h.bf16 %v1104
    %v1108 = vunpack.c.l.bf16 %v1105
    %v1109 = vunpack.c.h.bf16 %v1105
    %v1110 = vsel %vm117, %v1009, %v1061
    %v1111 = vsel %vm117, %v1022, %v1074
    %v1112 = vsel %vm117, %v1035, %v1087
    %v1113 = vsel %vm117, %v1048, %v1100
    %v1114 = vadd.f32 %v1106, %v1110
    %v1115 = vadd.f32 %v1107, %v1111
    %v1116 = vadd.f32 %v1108, %v1112
    %v1117 = vadd.f32 %v1109, %v1113
    %v1118 = vmul.f32 %v1114, 0.5
    %v1119 = vtanh.pop %v1118
    %v1120 = vmul.f32 %v1119, 0.5
    %v1121 = vadd.f32 %v1120, 0.5
    %v1122 = vmul.f32 %v1115, 0.5
    %v1123 = vtanh.pop %v1122
    %v1124 = vmul.f32 %v1123, 0.5
    %v1125 = vadd.f32 %v1124, 0.5
    %v1126 = vtanh.pop %v1116
    %v1127 = vmul.f32 %v1117, 0.5
    %v1128 = vtanh.pop %v1127
    %v1129 = vmul.f32 %v1128, 0.5
    %v1130 = vadd.f32 %v1129, 0.5
    %v1131 = vmul.f32 %v1125, %v993
    %v1132 = vmul.f32 %v1121, %v1126
    %v1133 = vadd.f32 %v1131, %v1132
    %v1134 = vtanh.pop %v1133
    %v1135 = vmul.f32 %v1130, %v1134
    %v1136 = vpack.c.bf16 %v1135, %v1135
    %s1137 = scalar_lea.vmem [#allocation9], 16
    %1138 = vst [vmem:[%s1137] sm:$0xf] %v1136
    %1139 = vmatpush.bf16.msra.mxu0 %v245
    %1140 = vmatpush.bf16.msra.mxu0 %v241
    %1141 = vmatpush.bf16.msra.mxu0 %v237
    %1142 = vmatpush.bf16.msra.mxu0 %v233
    %1143 = vmatpush.bf16.msra.mxu0 %v229
    %1144 = vmatpush.bf16.msra.mxu0 %v225
    %1145 = vmatpush.bf16.msra.mxu0 %v221
    %1146 = vmatpush.bf16.msra.mxu0 %v217
    %1147 = vmatmul.bf16.gmra.mxu0 %v1136
    %v1148 = vpop.f32.mrf.mxu0
    %v1149 = vadd.f32 0.0, %v1148
    %v1150 = vpop.f32.mrf.mxu0
    %1151 = vdwg.mxu0
    %1152 = vmatpush.bf16.msra.mxu0 %v246
    %1153 = vmatpush.bf16.msra.mxu0 %v242
    %1154 = vmatpush.bf16.msra.mxu0 %v238
    %1155 = vmatpush.bf16.msra.mxu0 %v234
    %1156 = vmatpush.bf16.msra.mxu0 %v230
    %1157 = vmatpush.bf16.msra.mxu0 %v226
    %1158 = vmatpush.bf16.msra.mxu0 %v222
    %1159 = vmatpush.bf16.msra.mxu0 %v218
    %1160 = vmatmul.bf16.gmra.mxu0 %v1136
    %v1161 = vpop.f32.mrf.mxu0
    %v1162 = vadd.f32 0.0, %v1161
    %v1163 = vpop.f32.mrf.mxu0
    %1164 = vdwg.mxu0
    %1165 = vmatpush.bf16.msra.mxu0 %v247
    %1166 = vmatpush.bf16.msra.mxu0 %v243
    %1167 = vmatpush.bf16.msra.mxu0 %v239
    %1168 = vmatpush.bf16.msra.mxu0 %v235
    %1169 = vmatpush.bf16.msra.mxu0 %v231
    %1170 = vmatpush.bf16.msra.mxu0 %v227
    %1171 = vmatpush.bf16.msra.mxu0 %v223
    %1172 = vmatpush.bf16.msra.mxu0 %v219
    %1173 = vmatmul.bf16.gmra.mxu0 %v1136
    %v1174 = vpop.f32.mrf.mxu0
    %v1175 = vadd.f32 0.0, %v1174
    %v1176 = vpop.f32.mrf.mxu0
    %1177 = vdwg.mxu0
    %1178 = vmatpush.bf16.msra.mxu0 %v248
    %1179 = vmatpush.bf16.msra.mxu0 %v244
    %1180 = vmatpush.bf16.msra.mxu0 %v240
    %1181 = vmatpush.bf16.msra.mxu0 %v236
    %1182 = vmatpush.bf16.msra.mxu0 %v232
    %1183 = vmatpush.bf16.msra.mxu0 %v228
    %1184 = vmatpush.bf16.msra.mxu0 %v224
    %1185 = vmatpush.bf16.msra.mxu0 %v220
    %1186 = vmatmul.bf16.gmra.mxu0 %v1136
    %v1187 = vpop.f32.mrf.mxu0
    %v1188 = vadd.f32 0.0, %v1187
    %v1189 = vpop.f32.mrf.mxu0
    %1190 = vdwg.mxu0
    %1191 = vmatpush.bf16.msra.mxu0 %v457
    %1192 = vmatpush.bf16.msra.mxu0 %v453
    %1193 = vmatpush.bf16.msra.mxu0 %v449
    %1194 = vmatpush.bf16.msra.mxu0 %v445
    %1195 = vmatpush.bf16.msra.mxu0 %v441
    %1196 = vmatpush.bf16.msra.mxu0 %v437
    %1197 = vmatpush.bf16.msra.mxu0 %v433
    %1198 = vmatpush.bf16.msra.mxu0 %v429
    %1199 = vmatmul.bf16.gmra.mxu0 %v1136
    %v1200 = vpop.f32.mrf.mxu0
    %v1201 = vadd.f32 0.0, %v1200
    %v1202 = vpop.f32.mrf.mxu0
    %1203 = vdwg.mxu0
    %1204 = vmatpush.bf16.msra.mxu0 %v458
    %1205 = vmatpush.bf16.msra.mxu0 %v454
    %1206 = vmatpush.bf16.msra.mxu0 %v450
    %1207 = vmatpush.bf16.msra.mxu0 %v446
    %1208 = vmatpush.bf16.msra.mxu0 %v442
    %1209 = vmatpush.bf16.msra.mxu0 %v438
    %1210 = vmatpush.bf16.msra.mxu0 %v434
    %1211 = vmatpush.bf16.msra.mxu0 %v430
    %1212 = vmatmul.bf16.gmra.mxu0 %v1136
    %v1213 = vpop.f32.mrf.mxu0
    %v1214 = vadd.f32 0.0, %v1213
    %v1215 = vpop.f32.mrf.mxu0
    %1216 = vdwg.mxu0
    %1217 = vmatpush.bf16.msra.mxu0 %v459
    %1218 = vmatpush.bf16.msra.mxu0 %v455
    %1219 = vmatpush.bf16.msra.mxu0 %v451
    %1220 = vmatpush.bf16.msra.mxu0 %v447
    %1221 = vmatpush.bf16.msra.mxu0 %v443
    %1222 = vmatpush.bf16.msra.mxu0 %v439
    %1223 = vmatpush.bf16.msra.mxu0 %v435
    %1224 = vmatpush.bf16.msra.mxu0 %v431
    %1225 = vmatmul.bf16.gmra.mxu0 %v1136
    %v1226 = vpop.f32.mrf.mxu0
    %v1227 = vadd.f32 0.0, %v1226
    %v1228 = vpop.f32.mrf.mxu0
    %1229 = vdwg.mxu0
    %1230 = vmatpush.bf16.msra.mxu0 %v460
    %1231 = vmatpush.bf16.msra.mxu0 %v456
    %1232 = vmatpush.bf16.msra.mxu0 %v452
    %1233 = vmatpush.bf16.msra.mxu0 %v448
    %1234 = vmatpush.bf16.msra.mxu0 %v444
    %1235 = vmatpush.bf16.msra.mxu0 %v440
    %1236 = vmatpush.bf16.msra.mxu0 %v436
    %1237 = vmatpush.bf16.msra.mxu0 %v432
    %1238 = vmatmul.bf16.gmra.mxu0 %v1136
    %v1239 = vpop.f32.mrf.mxu0
    %v1240 = vadd.f32 0.0, %v1239
    %v1241 = vpop.f32.mrf.mxu0
    %1242 = vdwg.mxu0
    %s1243 = scalar_lea.vmem [#allocation4], 80
    %v1244 = vld [vmem:[%s1243] sm:$0xff]
    %v1245 = vld [vmem:[%s1243 + $0x8] sm:$0xff]
    %v1246 = vunpack.c.l.bf16 %v1244
    %v1247 = vunpack.c.h.bf16 %v1244
    %v1248 = vunpack.c.l.bf16 %v1245
    %v1249 = vunpack.c.h.bf16 %v1245
    %v1250 = vsel %vm117, %v1149, %v1201
    %v1251 = vsel %vm117, %v1162, %v1214
    %v1252 = vsel %vm117, %v1175, %v1227
    %v1253 = vsel %vm117, %v1188, %v1240
    %v1254 = vadd.f32 %v1246, %v1250
    %v1255 = vadd.f32 %v1247, %v1251
    %v1256 = vadd.f32 %v1248, %v1252
    %v1257 = vadd.f32 %v1249, %v1253
    %v1258 = vmul.f32 %v1254, 0.5
    %v1259 = vtanh.pop %v1258
    %v1260 = vmul.f32 %v1259, 0.5
    %v1261 = vadd.f32 %v1260, 0.5
    %v1262 = vmul.f32 %v1255, 0.5
    %v1263 = vtanh.pop %v1262
    %v1264 = vmul.f32 %v1263, 0.5
    %v1265 = vadd.f32 %v1264, 0.5
    %v1266 = vtanh.pop %v1256
    %v1267 = vmul.f32 %v1257, 0.5
    %v1268 = vtanh.pop %v1267
    %v1269 = vmul.f32 %v1268, 0.5
    %v1270 = vadd.f32 %v1269, 0.5
    %v1271 = vmul.f32 %v1265, %v1133
    %v1272 = vmul.f32 %v1261, %v1266
    %v1273 = vadd.f32 %v1271, %v1272
    %v1274 = vtanh.pop %v1273
    %v1275 = vmul.f32 %v1270, %v1274
    %v1276 = vpack.c.bf16 %v1275, %v1275
    %s1277 = scalar_lea.vmem [#allocation9], 20
    %1278 = vst [vmem:[%s1277] sm:$0xf] %v1276
    %1279 = vmatpush.bf16.msra.mxu0 %v245
    %1280 = vmatpush.bf16.msra.mxu0 %v241
    %1281 = vmatpush.bf16.msra.mxu0 %v237
    %1282 = vmatpush.bf16.msra.mxu0 %v233
    %1283 = vmatpush.bf16.msra.mxu0 %v229
    %1284 = vmatpush.bf16.msra.mxu0 %v225
    %1285 = vmatpush.bf16.msra.mxu0 %v221
    %1286 = vmatpush.bf16.msra.mxu0 %v217
    %1287 = vmatmul.bf16.gmra.mxu0 %v1276
    %v1288 = vpop.f32.mrf.mxu0
    %v1289 = vadd.f32 0.0, %v1288
    %v1290 = vpop.f32.mrf.mxu0
    %1291 = vdwg.mxu0
    %1292 = vmatpush.bf16.msra.mxu0 %v246
    %1293 = vmatpush.bf16.msra.mxu0 %v242
    %1294 = vmatpush.bf16.msra.mxu0 %v238
    %1295 = vmatpush.bf16.msra.mxu0 %v234
    %1296 = vmatpush.bf16.msra.mxu0 %v230
    %1297 = vmatpush.bf16.msra.mxu0 %v226
    %1298 = vmatpush.bf16.msra.mxu0 %v222
    %1299 = vmatpush.bf16.msra.mxu0 %v218
    %1300 = vmatmul.bf16.gmra.mxu0 %v1276
    %v1301 = vpop.f32.mrf.mxu0
    %v1302 = vadd.f32 0.0, %v1301
    %v1303 = vpop.f32.mrf.mxu0
    %1304 = vdwg.mxu0
    %1305 = vmatpush.bf16.msra.mxu0 %v247
    %1306 = vmatpush.bf16.msra.mxu0 %v243
    %1307 = vmatpush.bf16.msra.mxu0 %v239
    %1308 = vmatpush.bf16.msra.mxu0 %v235
    %1309 = vmatpush.bf16.msra.mxu0 %v231
    %1310 = vmatpush.bf16.msra.mxu0 %v227
    %1311 = vmatpush.bf16.msra.mxu0 %v223
    %1312 = vmatpush.bf16.msra.mxu0 %v219
    %1313 = vmatmul.bf16.gmra.mxu0 %v1276
    %v1314 = vpop.f32.mrf.mxu0
    %v1315 = vadd.f32 0.0, %v1314
    %v1316 = vpop.f32.mrf.mxu0
    %1317 = vdwg.mxu0
    %1318 = vmatpush.bf16.msra.mxu0 %v248
    %1319 = vmatpush.bf16.msra.mxu0 %v244
    %1320 = vmatpush.bf16.msra.mxu0 %v240
    %1321 = vmatpush.bf16.msra.mxu0 %v236
    %1322 = vmatpush.bf16.msra.mxu0 %v232
    %1323 = vmatpush.bf16.msra.mxu0 %v228
    %1324 = vmatpush.bf16.msra.mxu0 %v224
    %1325 = vmatpush.bf16.msra.mxu0 %v220
    %1326 = vmatmul.bf16.gmra.mxu0 %v1276
    %v1327 = vpop.f32.mrf.mxu0
    %v1328 = vadd.f32 0.0, %v1327
    %v1329 = vpop.f32.mrf.mxu0
    %1330 = vdwg.mxu0
    %1331 = vmatpush.bf16.msra.mxu0 %v457
    %1332 = vmatpush.bf16.msra.mxu0 %v453
    %1333 = vmatpush.bf16.msra.mxu0 %v449
    %1334 = vmatpush.bf16.msra.mxu0 %v445
    %1335 = vmatpush.bf16.msra.mxu0 %v441
    %1336 = vmatpush.bf16.msra.mxu0 %v437
    %1337 = vmatpush.bf16.msra.mxu0 %v433
    %1338 = vmatpush.bf16.msra.mxu0 %v429
    %1339 = vmatmul.bf16.gmra.mxu0 %v1276
    %v1340 = vpop.f32.mrf.mxu0
    %v1341 = vadd.f32 0.0, %v1340
    %v1342 = vpop.f32.mrf.mxu0
    %1343 = vdwg.mxu0
    %1344 = vmatpush.bf16.msra.mxu0 %v458
    %1345 = vmatpush.bf16.msra.mxu0 %v454
    %1346 = vmatpush.bf16.msra.mxu0 %v450
    %1347 = vmatpush.bf16.msra.mxu0 %v446
    %1348 = vmatpush.bf16.msra.mxu0 %v442
    %1349 = vmatpush.bf16.msra.mxu0 %v438
    %1350 = vmatpush.bf16.msra.mxu0 %v434
    %1351 = vmatpush.bf16.msra.mxu0 %v430
    %1352 = vmatmul.bf16.gmra.mxu0 %v1276
    %v1353 = vpop.f32.mrf.mxu0
    %v1354 = vadd.f32 0.0, %v1353
    %v1355 = vpop.f32.mrf.mxu0
    %1356 = vdwg.mxu0
    %1357 = vmatpush.bf16.msra.mxu0 %v459
    %1358 = vmatpush.bf16.msra.mxu0 %v455
    %1359 = vmatpush.bf16.msra.mxu0 %v451
    %1360 = vmatpush.bf16.msra.mxu0 %v447
    %1361 = vmatpush.bf16.msra.mxu0 %v443
    %1362 = vmatpush.bf16.msra.mxu0 %v439
    %1363 = vmatpush.bf16.msra.mxu0 %v435
    %1364 = vmatpush.bf16.msra.mxu0 %v431
    %1365 = vmatmul.bf16.gmra.mxu0 %v1276
    %v1366 = vpop.f32.mrf.mxu0
    %v1367 = vadd.f32 0.0, %v1366
    %v1368 = vpop.f32.mrf.mxu0
    %1369 = vdwg.mxu0
    %1370 = vmatpush.bf16.msra.mxu0 %v460
    %1371 = vmatpush.bf16.msra.mxu0 %v456
    %1372 = vmatpush.bf16.msra.mxu0 %v452
    %1373 = vmatpush.bf16.msra.mxu0 %v448
    %1374 = vmatpush.bf16.msra.mxu0 %v444
    %1375 = vmatpush.bf16.msra.mxu0 %v440
    %1376 = vmatpush.bf16.msra.mxu0 %v436
    %1377 = vmatpush.bf16.msra.mxu0 %v432
    %1378 = vmatmul.bf16.gmra.mxu0 %v1276
    %v1379 = vpop.f32.mrf.mxu0
    %v1380 = vadd.f32 0.0, %v1379
    %v1381 = vpop.f32.mrf.mxu0
    %1382 = vdwg.mxu0
    %s1383 = scalar_lea.vmem [#allocation4], 96
    %v1384 = vld [vmem:[%s1383] sm:$0xff]
    %v1385 = vld [vmem:[%s1383 + $0x8] sm:$0xff]
    %v1386 = vunpack.c.l.bf16 %v1384
    %v1387 = vunpack.c.h.bf16 %v1384
    %v1388 = vunpack.c.l.bf16 %v1385
    %v1389 = vunpack.c.h.bf16 %v1385
    %v1390 = vsel %vm117, %v1289, %v1341
    %v1391 = vsel %vm117, %v1302, %v1354
    %v1392 = vsel %vm117, %v1315, %v1367
    %v1393 = vsel %vm117, %v1328, %v1380
    %v1394 = vadd.f32 %v1386, %v1390
    %v1395 = vadd.f32 %v1387, %v1391
    %v1396 = vadd.f32 %v1388, %v1392
    %v1397 = vadd.f32 %v1389, %v1393
    %v1398 = vmul.f32 %v1394, 0.5
    %v1399 = vtanh.pop %v1398
    %v1400 = vmul.f32 %v1399, 0.5
    %v1401 = vadd.f32 %v1400, 0.5
    %v1402 = vmul.f32 %v1395, 0.5
    %v1403 = vtanh.pop %v1402
    %v1404 = vmul.f32 %v1403, 0.5
    %v1405 = vadd.f32 %v1404, 0.5
    %v1406 = vtanh.pop %v1396
    %v1407 = vmul.f32 %v1397, 0.5
    %v1408 = vtanh.pop %v1407
    %v1409 = vmul.f32 %v1408, 0.5
    %v1410 = vadd.f32 %v1409, 0.5
    %v1411 = vmul.f32 %v1405, %v1273
    %v1412 = vmul.f32 %v1401, %v1406
    %v1413 = vadd.f32 %v1411, %v1412
    %v1414 = vtanh.pop %v1413
    %v1415 = vmul.f32 %v1410, %v1414
    %v1416 = vpack.c.bf16 %v1415, %v1415
    %s1417 = scalar_lea.vmem [#allocation9], 24
    %1418 = vst [vmem:[%s1417] sm:$0xf] %v1416
    %1419 = vmatpush.bf16.msra.mxu0 %v245
    %1420 = vmatpush.bf16.msra.mxu0 %v241
    %1421 = vmatpush.bf16.msra.mxu0 %v237
    %1422 = vmatpush.bf16.msra.mxu0 %v233
    %1423 = vmatpush.bf16.msra.mxu0 %v229
    %1424 = vmatpush.bf16.msra.mxu0 %v225
    %1425 = vmatpush.bf16.msra.mxu0 %v221
    %1426 = vmatpush.bf16.msra.mxu0 %v217
    %1427 = vmatmul.bf16.gmra.mxu0 %v1416
    %v1428 = vpop.f32.mrf.mxu0
    %v1429 = vadd.f32 0.0, %v1428
    %v1430 = vpop.f32.mrf.mxu0
    %1431 = vdwg.mxu0
    %1432 = vmatpush.bf16.msra.mxu0 %v246
    %1433 = vmatpush.bf16.msra.mxu0 %v242
    %1434 = vmatpush.bf16.msra.mxu0 %v238
    %1435 = vmatpush.bf16.msra.mxu0 %v234
    %1436 = vmatpush.bf16.msra.mxu0 %v230
    %1437 = vmatpush.bf16.msra.mxu0 %v226
    %1438 = vmatpush.bf16.msra.mxu0 %v222
    %1439 = vmatpush.bf16.msra.mxu0 %v218
    %1440 = vmatmul.bf16.gmra.mxu0 %v1416
    %v1441 = vpop.f32.mrf.mxu0
    %v1442 = vadd.f32 0.0, %v1441
    %v1443 = vpop.f32.mrf.mxu0
    %1444 = vdwg.mxu0
    %1445 = vmatpush.bf16.msra.mxu0 %v247
    %1446 = vmatpush.bf16.msra.mxu0 %v243
    %1447 = vmatpush.bf16.msra.mxu0 %v239
    %1448 = vmatpush.bf16.msra.mxu0 %v235
    %1449 = vmatpush.bf16.msra.mxu0 %v231
    %1450 = vmatpush.bf16.msra.mxu0 %v227
    %1451 = vmatpush.bf16.msra.mxu0 %v223
    %1452 = vmatpush.bf16.msra.mxu0 %v219
    %1453 = vmatmul.bf16.gmra.mxu0 %v1416
    %v1454 = vpop.f32.mrf.mxu0
    %v1455 = vadd.f32 0.0, %v1454
    %v1456 = vpop.f32.mrf.mxu0
    %1457 = vdwg.mxu0
    %1458 = vmatpush.bf16.msra.mxu0 %v248
    %1459 = vmatpush.bf16.msra.mxu0 %v244
    %1460 = vmatpush.bf16.msra.mxu0 %v240
    %1461 = vmatpush.bf16.msra.mxu0 %v236
    %1462 = vmatpush.bf16.msra.mxu0 %v232
    %1463 = vmatpush.bf16.msra.mxu0 %v228
    %1464 = vmatpush.bf16.msra.mxu0 %v224
    %1465 = vmatpush.bf16.msra.mxu0 %v220
    %1466 = vmatmul.bf16.gmra.mxu0 %v1416
    %v1467 = vpop.f32.mrf.mxu0
    %v1468 = vadd.f32 0.0, %v1467
    %v1469 = vpop.f32.mrf.mxu0
    %1470 = vdwg.mxu0
    %1471 = vmatpush.bf16.msra.mxu0 %v457
    %1472 = vmatpush.bf16.msra.mxu0 %v453
    %1473 = vmatpush.bf16.msra.mxu0 %v449
    %1474 = vmatpush.bf16.msra.mxu0 %v445
    %1475 = vmatpush.bf16.msra.mxu0 %v441
    %1476 = vmatpush.bf16.msra.mxu0 %v437
    %1477 = vmatpush.bf16.msra.mxu0 %v433
    %1478 = vmatpush.bf16.msra.mxu0 %v429
    %1479 = vmatmul.bf16.gmra.mxu0 %v1416
    %v1480 = vpop.f32.mrf.mxu0
    %v1481 = vadd.f32 0.0, %v1480
    %v1482 = vpop.f32.mrf.mxu0
    %1483 = vdwg.mxu0
    %1484 = vmatpush.bf16.msra.mxu0 %v458
    %1485 = vmatpush.bf16.msra.mxu0 %v454
    %1486 = vmatpush.bf16.msra.mxu0 %v450
    %1487 = vmatpush.bf16.msra.mxu0 %v446
    %1488 = vmatpush.bf16.msra.mxu0 %v442
    %1489 = vmatpush.bf16.msra.mxu0 %v438
    %1490 = vmatpush.bf16.msra.mxu0 %v434
    %1491 = vmatpush.bf16.msra.mxu0 %v430
    %1492 = vmatmul.bf16.gmra.mxu0 %v1416
    %v1493 = vpop.f32.mrf.mxu0
    %v1494 = vadd.f32 0.0, %v1493
    %v1495 = vpop.f32.mrf.mxu0
    %1496 = vdwg.mxu0
    %1497 = vmatpush.bf16.msra.mxu0 %v459
    %1498 = vmatpush.bf16.msra.mxu0 %v455
    %1499 = vmatpush.bf16.msra.mxu0 %v451
    %1500 = vmatpush.bf16.msra.mxu0 %v447
    %1501 = vmatpush.bf16.msra.mxu0 %v443
    %1502 = vmatpush.bf16.msra.mxu0 %v439
    %1503 = vmatpush.bf16.msra.mxu0 %v435
    %1504 = vmatpush.bf16.msra.mxu0 %v431
    %1505 = vmatmul.bf16.gmra.mxu0 %v1416
    %v1506 = vpop.f32.mrf.mxu0
    %v1507 = vadd.f32 0.0, %v1506
    %v1508 = vpop.f32.mrf.mxu0
    %1509 = vdwg.mxu0
    %1510 = vmatpush.bf16.msra.mxu0 %v460
    %1511 = vmatpush.bf16.msra.mxu0 %v456
    %1512 = vmatpush.bf16.msra.mxu0 %v452
    %1513 = vmatpush.bf16.msra.mxu0 %v448
    %1514 = vmatpush.bf16.msra.mxu0 %v444
    %1515 = vmatpush.bf16.msra.mxu0 %v440
    %1516 = vmatpush.bf16.msra.mxu0 %v436
    %1517 = vmatpush.bf16.msra.mxu0 %v432
    %1518 = vmatmul.bf16.gmra.mxu0 %v1416
    %v1519 = vpop.f32.mrf.mxu0
    %v1520 = vadd.f32 0.0, %v1519
    %v1521 = vpop.f32.mrf.mxu0
    %1522 = vdwg.mxu0
    %s1523 = scalar_lea.vmem [#allocation4], 112
    %v1524 = vld [vmem:[%s1523] sm:$0xff]
    %v1525 = vld [vmem:[%s1523 + $0x8] sm:$0xff]
    %v1526 = vunpack.c.l.bf16 %v1524
    %v1527 = vunpack.c.h.bf16 %v1524
    %v1528 = vunpack.c.l.bf16 %v1525
    %v1529 = vunpack.c.h.bf16 %v1525
    %v1530 = vsel %vm117, %v1429, %v1481
    %v1531 = vsel %vm117, %v1442, %v1494
    %v1532 = vsel %vm117, %v1455, %v1507
    %v1533 = vsel %vm117, %v1468, %v1520
    %v1534 = vadd.f32 %v1526, %v1530
    %v1535 = vadd.f32 %v1527, %v1531
    %v1536 = vadd.f32 %v1528, %v1532
    %v1537 = vadd.f32 %v1529, %v1533
    %v1538 = vmul.f32 %v1534, 0.5
    %v1539 = vtanh.pop %v1538
    %v1540 = vmul.f32 %v1539, 0.5
    %v1541 = vadd.f32 %v1540, 0.5
    %v1542 = vmul.f32 %v1535, 0.5
    %v1543 = vtanh.pop %v1542
    %v1544 = vmul.f32 %v1543, 0.5
    %v1545 = vadd.f32 %v1544, 0.5
    %v1546 = vtanh.pop %v1536
    %v1547 = vmul.f32 %v1537, 0.5
    %v1548 = vtanh.pop %v1547
    %v1549 = vmul.f32 %v1548, 0.5
    %v1550 = vadd.f32 %v1549, 0.5
    %v1551 = vmul.f32 %v1545, %v1413
    %v1552 = vmul.f32 %v1541, %v1546
    %v1553 = vadd.f32 %v1551, %v1552
    %v1554 = vtanh.pop %v1553
    %v1555 = vmul.f32 %v1550, %v1554
    %v1556 = vpack.c.bf16 %v1555, %v1555
    %s1557 = scalar_lea.vmem [#allocation9], 28
    %1558 = vst [vmem:[%s1557] sm:$0xf] %v1556
    %1559 = vst [vmem:[#allocation2] sm:$0xff] %v1555
    %1560 = vst [vmem:[#allocation3] sm:$0xff] %v1553
    // Predicated region
    $region22: #{tpu_custom_call.1} parent=1 // pred_check
      _
    $region23: #{tpu_custom_call.1} parent=1 // pred_check_branch
      %1562 = sbr.rel (0) target = $region25
    $region24: #{tpu_custom_call.1} parent=1 // pred_region
      %1564 = vsyncadd [#allocation6], 0
      %s1565 = sshll.u32 [#allocation9], 4
      %s1566 = int_to_ptr.vmem [resolvable:$true] %s1565
      %s1567 = sshll.u32 %s2, 4
      %s1568 = int_to_ptr.hbm [resolvable:$true] %s1567
      %1573 = dma.vmem_to_hbm [thread:$0]  %s1566, 512, %s1568, [#allocation6], 64, 64, 4
    $region25: #{tpu_custom_call.1} parent=1 // pred_fallthru
      _
    // Predicated region
    $region26: #{tpu_custom_call.1} parent=1 // pred_check
      _
    $region27: #{tpu_custom_call.1} parent=1 // pred_check_branch
      %1575 = sbr.rel (0) target = $region29
    $region28: #{tpu_custom_call.1} parent=1 // pred_region
      %1577 = dma.done [#allocation6], 512
    $region29: #{tpu_custom_call.1} parent=1 // pred_fallthru
      _
    %1578 = vsyncpa [#allocation5], 1
    %1579 = vsyncpa [#allocation8], 1
    %1580 = vsyncpa [#allocation6], 1

</llo_original>
